<compile_context>
chip_gen: v5e
topology: v5e:2x2
jax: 0.10.0
libtpu: 0.0.40
codegen_flags: <defaults>
</compile_context>

<pallas_src>
import numpy as np
import jax
import jax.numpy as jnp
from jax import lax
from jax.experimental import pallas as pl
from jax.experimental.pallas import tpu as pltpu


def _round_up(x, m):
    return ((x + m - 1) // m) * m


def _full_spec(shape):
    n = len(shape)
    return pl.BlockSpec(shape, lambda *_, n=n: (0,) * n)


# ----------------------------------------------------------------------------
# Static index tables (pool-ordered im2col and conv2 tap selection)
# ----------------------------------------------------------------------------
_K = np.arange(4)            # position inside the 2x2 pool window of conv1
_KI, _KJ = _K // 2, _K % 2
_P = np.arange(16)           # 4x4 pooled spatial position after conv1
_PI, _PJ = _P // 4, _P % 4
_T = np.arange(9)            # 3x3 conv tap
_DI, _DJ = _T // 3, _T % 3

_ROWS = 2 * _PI[None, :, None] + _KI[:, None, None] + _DI[None, None, :]   # [4,16,9]
_COLS = 2 * _PJ[None, :, None] + _KJ[:, None, None] + _DJ[None, None, :]   # [4,16,9]

# S[o, tap, p] = 1 iff conv1-pooled position p feeds conv2 output o through tap
_S = np.zeros((4, 9, 16), np.float32)
for _oi in range(2):
    for _oj in range(2):
        for _di in range(3):
            for _dj in range(3):
                _S[_oi * 2 + _oj, _di * 3 + _dj,
                   (_oi + _di) * 4 + (_oj + _dj)] = 1.0


def _build_patches(imgs):
    # imgs: [M, 10, 10] -> [M, 576], column order (k, p, tap), lane-dense, M-leading
    M = imgs.shape[0]
    patches = imgs[:, _ROWS, _COLS]            # [M, 4, 16, 9]
    return patches.reshape(M, 576)


def _conv_weights(w1, b1, w2, b2):
    # torch layouts: w1 [10,1,3,3]  b1 [10]  w2 [30,10,3,3]  b2 [30]
    w1col = jnp.transpose(w1[:, 0], (1, 2, 0)).reshape(9, 10)          # [tap, cout]
    w1big = jnp.kron(jnp.eye(64, dtype=w1col.dtype), w1col)            # [576, 640]
    b1t = jnp.tile(b1.reshape(1, 10), (1, 16))                         # [1, 160]
    w2col = jnp.transpose(w2, (2, 3, 1, 0)).reshape(9, 10, 30)         # [tap, cin, cout]
    w2big = jnp.einsum("otp,tic->pioc", _S, w2col).reshape(160, 120)   # [160, 120]
    b2t = b2.reshape(1, 30)
    return w1big, b1t, w2big, b2t


# ----------------------------------------------------------------------------
# Convolution-module kernel: two matmuls + two pool-maxes per tile.
# ----------------------------------------------------------------------------
def _conv_kernel(wsel_ref, patches_ref, w1_ref, b1_ref, w2_ref, b2_ref, out_ref):
    del wsel_ref  # only used by the index_maps
    # conv1 at all 64 sites: [tm,576] @ [576,640] -> columns ordered (k, p, c)
    z1 = jnp.dot(patches_ref[...], w1_ref[...], preferred_element_type=jnp.float32)
    # 2x2 max-pool over the k axis (4 lane slices of 160), bias+relu hoisted
    m1 = jnp.maximum(jnp.maximum(z1[:, 0:160], z1[:, 160:320]),
                     jnp.maximum(z1[:, 320:480], z1[:, 480:640]))
    pooled = jnp.maximum(m1 + b1_ref[...], 0.0)                        # [tm, 160]
    # conv2 at all 4 output sites: [tm,160] @ [160,120] -> columns (o, cout)
    z2 = jnp.dot(pooled, w2_ref[...], preferred_element_type=jnp.float32)
    # final 2x2 max-pool over the o axis (4 lane slices of 30), bias+relu hoisted
    m2 = jnp.maximum(jnp.maximum(z2[:, 0:30], z2[:, 30:60]),
                     jnp.maximum(z2[:, 60:90], z2[:, 90:120]))
    out_ref[...] = jnp.maximum(m2 + b2_ref[...], 0.0)                  # [tm, 30]


def conv_features_dual(bin_imgs, item_imgs, bin_w, item_w, *, max_tile=256):
    """Runs the bin and item Convolution modules in one pipelined pallas_call.

    Returns (bin_feat [Mb,30], item_feat [Mi,30])."""
    Mb, Mi = bin_imgs.shape[0], item_imgs.shape[0]
    tm = min(max_tile, _round_up(max(Mb, Mi), 8))      # (8,128)-safe, VMEM-safe tile
    Mb_pad, Mi_pad = _round_up(Mb, tm), _round_up(Mi, tm)
    nb, ni = Mb_pad // tm, Mi_pad // tm

    pb = _build_patches(bin_imgs.astype(jnp.float32))
    pit = _build_patches(item_imgs.astype(jnp.float32))
    patches = jnp.concatenate(
        [jnp.pad(pb, ((0, Mb_pad - Mb), (0, 0))),
         jnp.pad(pit, ((0, Mi_pad - Mi), (0, 0)))], axis=0)            # [M_total, 576]

    w1b, b1b, w2b, b2b = bin_w
    w1i, b1i, w2i, b2i = item_w
    w1_all = jnp.stack([w1b, w1i])        # [2, 576, 640]
    b1_all = jnp.stack([b1b, b1i])        # [2, 1, 160]
    w2_all = jnp.stack([w2b, w2i])        # [2, 160, 120]
    b2_all = jnp.stack([b2b, b2i])        # [2, 1, 30]

    # per-tile weight-set selector (0 = bin, 1 = item), scalar-prefetched to SMEM
    wsel = jnp.asarray(np.concatenate([np.zeros(nb, np.int32),
                                       np.ones(ni, np.int32)]))

    feats = pl.pallas_call(
        _conv_kernel,
        out_shape=jax.ShapeDtypeStruct((Mb_pad + Mi_pad, 30), jnp.float32),
        grid_spec=pltpu.PrefetchScalarGridSpec(
            num_scalar_prefetch=1,
            grid=(nb + ni,),
            in_specs=[
                pl.BlockSpec((tm, 576), lambda i, ws: (i, 0)),
                pl.BlockSpec((None, 576, 640), lambda i, ws: (ws[i], 0, 0)),
                pl.BlockSpec((None, 1, 160), lambda i, ws: (ws[i], 0, 0)),
                pl.BlockSpec((None, 160, 120), lambda i, ws: (ws[i], 0, 0)),
                pl.BlockSpec((None, 1, 30), lambda i, ws: (ws[i], 0, 0)),
            ],
            out_specs=pl.BlockSpec((tm, 30), lambda i, ws: (i, 0)),
        ),
        compiler_params=pltpu.CompilerParams(
            dimension_semantics=("parallel",)),
    )(wsel, patches, w1_all, b1_all, w2_all, b2_all)

    return feats[:Mb], feats[Mb_pad:Mb_pad + Mi]


# ----------------------------------------------------------------------------
# Head kernel: sum over items + fc1(60->200)+relu + fc2(200->200)+relu
#              + fc(200->200) + tanh.  The 60-wide concat is a split matmul.
# ----------------------------------------------------------------------------
def _head_kernel(item_ref, bin_ref, w1a_ref, w1b_ref, b1_ref,
                 w2_ref, b2_ref, w3_ref, b3_ref, out_ref):
    item_sum = jnp.sum(item_ref[...], axis=1)                          # [B, 30]
    h = (jnp.dot(item_sum, w1a_ref[...], preferred_element_type=jnp.float32)
         + jnp.dot(bin_ref[...], w1b_ref[...], preferred_element_type=jnp.float32)
         + b1_ref[...])
    h = jnp.maximum(h, 0.0)
    h = jnp.maximum(jnp.dot(h, w2_ref[...], preferred_element_type=jnp.float32)
                    + b2_ref[...], 0.0)
    out_ref[...] = jnp.tanh(jnp.dot(h, w3_ref[...],
                                    preferred_element_type=jnp.float32) + b3_ref[...])


# ----------------------------------------------------------------------------
# Parameters (PyTorch layouts), deterministic init
# ----------------------------------------------------------------------------
def init_params(key):
    ks = jax.random.split(key, 14)

    def u(k, shape, fan_in):
        bound = 1.0 / np.sqrt(fan_in)
        return jax.random.uniform(k, shape, jnp.float32, -bound, bound)

    return {
        "bin_c1_w": u(ks[0], (10, 1, 3, 3), 9), "bin_c1_b": u(ks[1], (10,), 9),
        "bin_c2_w": u(ks[2], (30, 10, 3, 3), 90), "bin_c2_b": u(ks[3], (30,), 90),
        "item_c1_w": u(ks[4], (10, 1, 3, 3), 9), "item_c1_b": u(ks[5], (10,), 9),
        "item_c2_w": u(ks[6], (30, 10, 3, 3), 90), "item_c2_b": u(ks[7], (30,), 90),
        "fc1_w": u(ks[8], (200, 60), 60), "fc1_b": u(ks[9], (200,), 60),
        "fc2_w": u(ks[10], (200, 200), 200), "fc2_b": u(ks[11], (200,), 200),
        "fc_w": u(ks[12], (200, 200), 200), "fc_b": u(ks[13], (200,), 200),
    }


# ----------------------------------------------------------------------------
# Full forward (Pallas)
# ----------------------------------------------------------------------------
def representation_network_pallas(x, params):
    B = x.shape[0]
    n_item = x.shape[3] - 1

    bin_imgs = x[:, :, :, 0]                                                  # [B,10,10]
    item_imgs = jnp.transpose(x[:, :, :, 1:], (0, 3, 1, 2)).reshape(B * n_item, 10, 10)

    bin_w = _conv_weights(params["bin_c1_w"], params["bin_c1_b"],
                          params["bin_c2_w"], params["bin_c2_b"])
    item_w = _conv_weights(params["item_c1_w"], params["item_c1_b"],
                           params["item_c2_w"], params["item_c2_b"])

    bin_feat, item_feat = conv_features_dual(bin_imgs, item_imgs, bin_w, item_w)
    item_feat = item_feat.reshape(B, n_item, 30)

    w1t = params["fc1_w"].T                      # [60, 200]
    w1a, w1b = w1t[:30], w1t[30:]                # item part, bin part (concat order)
    w2t = params["fc2_w"].T
    w3t = params["fc_w"].T
    b1 = params["fc1_b"].reshape(1, 200)
    b2 = params["fc2_b"].reshape(1, 200)
    b3 = params["fc_b"].reshape(1, 200)

    args = (item_feat, bin_feat, w1a, w1b, b1, w2t, b2, w3t, b3)
    return pl.pallas_call(
        _head_kernel,
        out_shape=jax.ShapeDtypeStruct((B, 200), jnp.float32),
        grid=(1,),
        in_specs=[_full_spec(a.shape) for a in args],
        out_specs=_full_spec((B, 200)),
        compiler_params=pltpu.CompilerParams(dimension_semantics=("arbitrary",)),
    )(*args)


# ----------------------------------------------------------------------------
# Pure-JAX reference (mirrors the PyTorch forward) for a correctness check
# ----------------------------------------------------------------------------
def representation_network_ref(x, params):
    B = x.shape[0]
    n_item = x.shape[3] - 1
    dn = ("NCHW", "OIHW", "NCHW")

    def conv_module(z, w1, b1, w2, b2):           # z: [M,1,10,10] NCHW
        z = lax.conv_general_dilated(z, w1, (1, 1), "VALID", dimension_numbers=dn)
        z = jnp.maximum(z + b1[None, :, None, None], 0.0)
        z = lax.reduce_window(z, -jnp.inf, lax.max, (1, 1, 2, 2), (1, 1, 2, 2), "VALID")
        z = lax.conv_general_dilated(z, w2, (1, 1), "VALID", dimension_numbers=dn)
        z = jnp.maximum(z + b2[None, :, None, None], 0.0)
        z = lax.reduce_window(z, -jnp.inf, lax.max, (1, 1, 2, 2), (1, 1, 2, 2), "VALID")
        return z.reshape(z.shape[0], -1)

    bin_ = jnp.transpose(x[:, :, :, :1], (0, 3, 1, 2))
    bin_feat = conv_module(bin_, params["bin_c1_w"], params["bin_c1_b"],
                           params["bin_c2_w"], params["bin_c2_b"])

    item = jnp.transpose(x[:, :, :, 1:], (0, 3, 1, 2)).reshape(B * n_item, 10, 10, 1)
    item = jnp.transpose(item, (0, 3, 1, 2))
    item_feat = conv_module(item, params["item_c1_w"], params["item_c1_b"],
                            params["item_c2_w"], params["item_c2_b"])
    item_feat = item_feat.reshape(B, n_item, -1).sum(axis=1)

    concat = jnp.concatenate([item_feat, bin_feat], axis=1)
    h = jnp.maximum(concat @ params["fc1_w"].T + params["fc1_b"], 0.0)
    h = jnp.maximum(h @ params["fc2_w"].T + params["fc2_b"], 0.0)
    return jnp.tanh(h @ params["fc_w"].T + params["fc_b"])


if __name__ == "__main__":
    key = jax.random.PRNGKey(0)
    pkey, xkey = jax.random.split(key)
    params = init_params(pkey)

    B, n_item = 2, 3
    x = jax.random.normal(xkey, (B, 10, 10, 1 + n_item), jnp.float32)

    fwd = jax.jit(representation_network_pallas)
    out = jax.block_until_ready(fwd(x, params))

    ref = representation_network_ref(x, params)
    np.testing.assert_allclose(np.asarray(out), np.asarray(ref), rtol=1e-4, atol=1e-4)
    print("KERNEL_OK")
</pallas_src>

<mosaic_0001>
module attributes {stable_mosaic.version = 11 : i64} {
  func.func @_conv_kernel(%arg0: i32, %arg1: memref<2xi32, #tpu.memory_space<smem>>, %arg2: memref<8x576xf32, #tpu.memory_space<vmem>>, %arg3: memref<1x576x640xf32, #tpu.memory_space<vmem>>, %arg4: memref<1x1x160xf32, #tpu.memory_space<vmem>>, %arg5: memref<1x160x120xf32, #tpu.memory_space<vmem>>, %arg6: memref<1x1x30xf32, #tpu.memory_space<vmem>>, %arg7: memref<8x30xf32, #tpu.memory_space<vmem>>) attributes {dimension_semantics = [#tpu.dimension_semantics<parallel>], iteration_bounds = array<i64: 2>, scalar_prefetch = 1 : i64, scratch_operands = 0 : i64, tpu.core_type = #tpu.core_type<tc>, window_params = [{transform_indices = @transform_0, window_bounds = array<i64: 8, 576>}, {transform_indices = @transform_1, window_bounds = array<i64: 1, 576, 640>}, {transform_indices = @transform_2, window_bounds = array<i64: 1, 1, 160>}, {transform_indices = @transform_3, window_bounds = array<i64: 1, 160, 120>}, {transform_indices = @transform_4, window_bounds = array<i64: 1, 1, 30>}, {transform_indices = @transform_5, window_bounds = array<i64: 8, 30>}]} {
    %c0 = arith.constant 0 : index
    %c0_0 = arith.constant 0 : index
    %0 = vector.load %arg2[%c0, %c0_0] : memref<8x576xf32, #tpu.memory_space<vmem>>, vector<8x576xf32>
    %c0_1 = arith.constant 0 : index
    %c0_2 = arith.constant 0 : index
    %c0_3 = arith.constant 0 : index
    %1 = vector.load %arg3[%c0_1, %c0_2, %c0_3] : memref<1x576x640xf32, #tpu.memory_space<vmem>>, vector<1x576x640xf32>
    %2 = vector.shape_cast %1 : vector<1x576x640xf32> to vector<576x640xf32>
    %cst = arith.constant dense<0.000000e+00> : vector<8x640xf32>
    %3 = tpu.matmul %0, %2, %cst {dimension_numbers = #tpu.dot_dimension_numbers<[1], [0], [0], [1], [0, 0, 1, 1], [], []>} : vector<8x576xf32>, vector<576x640xf32>, vector<8x640xf32> -> vector<8x640xf32>
    %4 = vector.extract_strided_slice %3 {offsets = [0, 0], sizes = [8, 160], strides = [1, 1]} : vector<8x640xf32> to vector<8x160xf32>
    %5 = vector.extract_strided_slice %3 {offsets = [0, 160], sizes = [8, 160], strides = [1, 1]} : vector<8x640xf32> to vector<8x160xf32>
    %6 = arith.maximumf %4, %5 : vector<8x160xf32>
    %7 = vector.extract_strided_slice %3 {offsets = [0, 320], sizes = [8, 160], strides = [1, 1]} : vector<8x640xf32> to vector<8x160xf32>
    %8 = vector.extract_strided_slice %3 {offsets = [0, 480], sizes = [8, 160], strides = [1, 1]} : vector<8x640xf32> to vector<8x160xf32>
    %9 = arith.maximumf %7, %8 : vector<8x160xf32>
    %10 = arith.maximumf %6, %9 : vector<8x160xf32>
    %c0_4 = arith.constant 0 : index
    %c0_5 = arith.constant 0 : index
    %c0_6 = arith.constant 0 : index
    %11 = vector.load %arg4[%c0_4, %c0_5, %c0_6] : memref<1x1x160xf32, #tpu.memory_space<vmem>>, vector<1x1x160xf32>
    %12 = vector.shape_cast %11 : vector<1x1x160xf32> to vector<1x160xf32>
    %13 = vector.broadcast %12 : vector<1x160xf32> to vector<8x160xf32>
    %14 = arith.addf %10, %13 : vector<8x160xf32>
    %cst_7 = arith.constant 0.000000e+00 : f32
    %15 = vector.broadcast %cst_7 : f32 to vector<8x160xf32>
    %16 = arith.maximumf %14, %15 : vector<8x160xf32>
    %c0_8 = arith.constant 0 : index
    %c0_9 = arith.constant 0 : index
    %c0_10 = arith.constant 0 : index
    %17 = vector.load %arg5[%c0_8, %c0_9, %c0_10] : memref<1x160x120xf32, #tpu.memory_space<vmem>>, vector<1x160x120xf32>
    %18 = vector.shape_cast %17 : vector<1x160x120xf32> to vector<160x120xf32>
    %cst_11 = arith.constant dense<0.000000e+00> : vector<8x120xf32>
    %19 = tpu.matmul %16, %18, %cst_11 {dimension_numbers = #tpu.dot_dimension_numbers<[1], [0], [0], [1], [0, 0, 1, 1], [], []>} : vector<8x160xf32>, vector<160x120xf32>, vector<8x120xf32> -> vector<8x120xf32>
    %20 = vector.extract_strided_slice %19 {offsets = [0, 0], sizes = [8, 30], strides = [1, 1]} : vector<8x120xf32> to vector<8x30xf32>
    %21 = vector.extract_strided_slice %19 {offsets = [0, 30], sizes = [8, 30], strides = [1, 1]} : vector<8x120xf32> to vector<8x30xf32>
    %22 = arith.maximumf %20, %21 : vector<8x30xf32>
    %23 = vector.extract_strided_slice %19 {offsets = [0, 60], sizes = [8, 30], strides = [1, 1]} : vector<8x120xf32> to vector<8x30xf32>
    %24 = vector.extract_strided_slice %19 {offsets = [0, 90], sizes = [8, 30], strides = [1, 1]} : vector<8x120xf32> to vector<8x30xf32>
    %25 = arith.maximumf %23, %24 : vector<8x30xf32>
    %26 = arith.maximumf %22, %25 : vector<8x30xf32>
    %c0_12 = arith.constant 0 : index
    %c0_13 = arith.constant 0 : index
    %c0_14 = arith.constant 0 : index
    %27 = vector.load %arg6[%c0_12, %c0_13, %c0_14] : memref<1x1x30xf32, #tpu.memory_space<vmem>>, vector<1x1x30xf32>
    %28 = vector.shape_cast %27 : vector<1x1x30xf32> to vector<1x30xf32>
    %29 = vector.broadcast %28 : vector<1x30xf32> to vector<8x30xf32>
    %30 = arith.addf %26, %29 : vector<8x30xf32>
    %cst_15 = arith.constant 0.000000e+00 : f32
    %31 = vector.broadcast %cst_15 : f32 to vector<8x30xf32>
    %32 = arith.maximumf %30, %31 : vector<8x30xf32>
    %c0_16 = arith.constant 0 : index
    %c0_17 = arith.constant 0 : index
    %33 = vector.load %arg7[%c0_16, %c0_17] : memref<8x30xf32, #tpu.memory_space<vmem>>, vector<8x30xf32>
    tpu.vector_store %arg7[%c0_16, %c0_17], %32 {strides = array<i32>} : memref<8x30xf32, #tpu.memory_space<vmem>>, vector<8x30xf32>,
    return
  }
  func.func @transform_0(%arg0: i32, %arg1: memref<2xi32, #tpu.memory_space<smem>>) -> (i32, i32) {
    %c0_i32 = arith.constant 0 : i32
    %c0_i32_0 = arith.constant 0 : i32
    return %arg0, %c0_i32 : i32, i32
  }
  func.func @transform_1(%arg0: i32, %arg1: memref<2xi32, #tpu.memory_space<smem>>) -> (i32, i32, i32) {
    %0 = arith.index_cast %arg0 : i32 to index
    %1 = memref.load %arg1[%0] : memref<2xi32, #tpu.memory_space<smem>>
    %c0_i32 = arith.constant 0 : i32
    %c0_i32_0 = arith.constant 0 : i32
    %c0_i32_1 = arith.constant 0 : i32
    return %1, %c0_i32, %c0_i32_0 : i32, i32, i32
  }
  func.func @transform_2(%arg0: i32, %arg1: memref<2xi32, #tpu.memory_space<smem>>) -> (i32, i32, i32) {
    %0 = arith.index_cast %arg0 : i32 to index
    %1 = memref.load %arg1[%0] : memref<2xi32, #tpu.memory_space<smem>>
    %c0_i32 = arith.constant 0 : i32
    %c0_i32_0 = arith.constant 0 : i32
    %c0_i32_1 = arith.constant 0 : i32
    return %1, %c0_i32, %c0_i32_0 : i32, i32, i32
  }
  func.func @transform_3(%arg0: i32, %arg1: memref<2xi32, #tpu.memory_space<smem>>) -> (i32, i32, i32) {
    %0 = arith.index_cast %arg0 : i32 to index
    %1 = memref.load %arg1[%0] : memref<2xi32, #tpu.memory_space<smem>>
    %c0_i32 = arith.constant 0 : i32
    %c0_i32_0 = arith.constant 0 : i32
    %c0_i32_1 = arith.constant 0 : i32
    return %1, %c0_i32, %c0_i32_0 : i32, i32, i32
  }
  func.func @transform_4(%arg0: i32, %arg1: memref<2xi32, #tpu.memory_space<smem>>) -> (i32, i32, i32) {
    %0 = arith.index_cast %arg0 : i32 to index
    %1 = memref.load %arg1[%0] : memref<2xi32, #tpu.memory_space<smem>>
    %c0_i32 = arith.constant 0 : i32
    %c0_i32_0 = arith.constant 0 : i32
    %c0_i32_1 = arith.constant 0 : i32
    return %1, %c0_i32, %c0_i32_0 : i32, i32, i32
  }
  func.func @transform_5(%arg0: i32, %arg1: memref<2xi32, #tpu.memory_space<smem>>) -> (i32, i32) {
    %c0_i32 = arith.constant 0 : i32
    %c0_i32_0 = arith.constant 0 : i32
    return %arg0, %c0_i32 : i32, i32
  }
}

module attributes {stable_mosaic.version = 11 : i64} {
  func.func @_head_kernel(%arg0: i32, %arg1: memref<2x3x30xf32, #tpu.memory_space<vmem>>, %arg2: memref<2x30xf32, #tpu.memory_space<vmem>>, %arg3: memref<30x200xf32, #tpu.memory_space<vmem>>, %arg4: memref<30x200xf32, #tpu.memory_space<vmem>>, %arg5: memref<1x200xf32, #tpu.memory_space<vmem>>, %arg6: memref<200x200xf32, #tpu.memory_space<vmem>>, %arg7: memref<1x200xf32, #tpu.memory_space<vmem>>, %arg8: memref<200x200xf32, #tpu.memory_space<vmem>>, %arg9: memref<1x200xf32, #tpu.memory_space<vmem>>, %arg10: memref<2x200xf32, #tpu.memory_space<vmem>>) attributes {dimension_semantics = [#tpu.dimension_semantics<arbitrary>], iteration_bounds = array<i64: 1>, scalar_prefetch = 0 : i64, scratch_operands = 0 : i64, tpu.core_type = #tpu.core_type<tc>, window_params = [{pipeline_mode = #tpu.pipeline_mode<synchronous>, transform_indices = @transform_0, window_bounds = array<i64: 2, 3, 30>}, {pipeline_mode = #tpu.pipeline_mode<synchronous>, transform_indices = @transform_1, window_bounds = array<i64: 2, 30>}, {pipeline_mode = #tpu.pipeline_mode<synchronous>, transform_indices = @transform_2, window_bounds = array<i64: 30, 200>}, {pipeline_mode = #tpu.pipeline_mode<synchronous>, transform_indices = @transform_3, window_bounds = array<i64: 30, 200>}, {pipeline_mode = #tpu.pipeline_mode<synchronous>, transform_indices = @transform_4, window_bounds = array<i64: 1, 200>}, {pipeline_mode = #tpu.pipeline_mode<synchronous>, transform_indices = @transform_5, window_bounds = array<i64: 200, 200>}, {pipeline_mode = #tpu.pipeline_mode<synchronous>, transform_indices = @transform_6, window_bounds = array<i64: 1, 200>}, {pipeline_mode = #tpu.pipeline_mode<synchronous>, transform_indices = @transform_7, window_bounds = array<i64: 200, 200>}, {pipeline_mode = #tpu.pipeline_mode<synchronous>, transform_indices = @transform_8, window_bounds = array<i64: 1, 200>}, {pipeline_mode = #tpu.pipeline_mode<synchronous>, transform_indices = @transform_9, window_bounds = array<i64: 2, 200>}]} {
    %c0 = arith.constant 0 : index
    %c0_0 = arith.constant 0 : index
    %c0_1 = arith.constant 0 : index
    %0 = vector.load %arg1[%c0, %c0_0, %c0_1] : memref<2x3x30xf32, #tpu.memory_space<vmem>>, vector<2x3x30xf32>
    %cst = arith.constant dense<0.000000e+00> : vector<2x30xf32>
    %1 = vector.multi_reduction <add>, %0, %cst [1] : vector<2x3x30xf32> to vector<2x30xf32>
    %c0_2 = arith.constant 0 : index
    %c0_3 = arith.constant 0 : index
    %2 = vector.load %arg3[%c0_2, %c0_3] : memref<30x200xf32, #tpu.memory_space<vmem>>, vector<30x200xf32>
    %cst_4 = arith.constant dense<0.000000e+00> : vector<2x200xf32>
    %3 = tpu.matmul %1, %2, %cst_4 {dimension_numbers = #tpu.dot_dimension_numbers<[1], [0], [0], [1], [0, 0, 1, 1], [], []>} : vector<2x30xf32>, vector<30x200xf32>, vector<2x200xf32> -> vector<2x200xf32>
    %c0_5 = arith.constant 0 : index
    %c0_6 = arith.constant 0 : index
    %4 = vector.load %arg2[%c0_5, %c0_6] : memref<2x30xf32, #tpu.memory_space<vmem>>, vector<2x30xf32>
    %c0_7 = arith.constant 0 : index
    %c0_8 = arith.constant 0 : index
    %5 = vector.load %arg4[%c0_7, %c0_8] : memref<30x200xf32, #tpu.memory_space<vmem>>, vector<30x200xf32>
    %cst_9 = arith.constant dense<0.000000e+00> : vector<2x200xf32>
    %6 = tpu.matmul %4, %5, %cst_9 {dimension_numbers = #tpu.dot_dimension_numbers<[1], [0], [0], [1], [0, 0, 1, 1], [], []>} : vector<2x30xf32>, vector<30x200xf32>, vector<2x200xf32> -> vector<2x200xf32>
    %7 = arith.addf %3, %6 : vector<2x200xf32>
    %c0_10 = arith.constant 0 : index
    %c0_11 = arith.constant 0 : index
    %8 = vector.load %arg5[%c0_10, %c0_11] : memref<1x200xf32, #tpu.memory_space<vmem>>, vector<1x200xf32>
    %9 = vector.broadcast %8 : vector<1x200xf32> to vector<2x200xf32>
    %10 = arith.addf %7, %9 : vector<2x200xf32>
    %cst_12 = arith.constant 0.000000e+00 : f32
    %11 = vector.broadcast %cst_12 : f32 to vector<2x200xf32>
    %12 = arith.maximumf %10, %11 : vector<2x200xf32>
    %c0_13 = arith.constant 0 : index
    %c0_14 = arith.constant 0 : index
    %13 = vector.load %arg6[%c0_13, %c0_14] : memref<200x200xf32, #tpu.memory_space<vmem>>, vector<200x200xf32>
    %cst_15 = arith.constant dense<0.000000e+00> : vector<2x200xf32>
    %14 = tpu.matmul %12, %13, %cst_15 {dimension_numbers = #tpu.dot_dimension_numbers<[1], [0], [0], [1], [0, 0, 1, 1], [], []>} : vector<2x200xf32>, vector<200x200xf32>, vector<2x200xf32> -> vector<2x200xf32>
    %c0_16 = arith.constant 0 : index
    %c0_17 = arith.constant 0 : index
    %15 = vector.load %arg7[%c0_16, %c0_17] : memref<1x200xf32, #tpu.memory_space<vmem>>, vector<1x200xf32>
    %16 = vector.broadcast %15 : vector<1x200xf32> to vector<2x200xf32>
    %17 = arith.addf %14, %16 : vector<2x200xf32>
    %cst_18 = arith.constant 0.000000e+00 : f32
    %18 = vector.broadcast %cst_18 : f32 to vector<2x200xf32>
    %19 = arith.maximumf %17, %18 : vector<2x200xf32>
    %c0_19 = arith.constant 0 : index
    %c0_20 = arith.constant 0 : index
    %20 = vector.load %arg8[%c0_19, %c0_20] : memref<200x200xf32, #tpu.memory_space<vmem>>, vector<200x200xf32>
    %cst_21 = arith.constant dense<0.000000e+00> : vector<2x200xf32>
    %21 = tpu.matmul %19, %20, %cst_21 {dimension_numbers = #tpu.dot_dimension_numbers<[1], [0], [0], [1], [0, 0, 1, 1], [], []>} : vector<2x200xf32>, vector<200x200xf32>, vector<2x200xf32> -> vector<2x200xf32>
    %c0_22 = arith.constant 0 : index
    %c0_23 = arith.constant 0 : index
    %22 = vector.load %arg9[%c0_22, %c0_23] : memref<1x200xf32, #tpu.memory_space<vmem>>, vector<1x200xf32>
    %23 = vector.broadcast %22 : vector<1x200xf32> to vector<2x200xf32>
    %24 = arith.addf %21, %23 : vector<2x200xf32>
    %25 = math.tanh %24 : vector<2x200xf32>
    %c0_24 = arith.constant 0 : index
    %c0_25 = arith.constant 0 : index
    %26 = vector.load %arg10[%c0_24, %c0_25] : memref<2x200xf32, #tpu.memory_space<vmem>>, vector<2x200xf32>
    tpu.vector_store %arg10[%c0_24, %c0_25], %25 {strides = array<i32>} : memref<2x200xf32, #tpu.memory_space<vmem>>, vector<2x200xf32>,
    return
  }
  func.func @transform_0(%arg0: i32) -> (i32, i32, i32) {
    %c0_i32 = arith.constant 0 : i32
    %c0_i32_0 = arith.constant 0 : i32
    %c0_i32_1 = arith.constant 0 : i32
    %c0_i32_2 = arith.constant 0 : i32
    return %c0_i32, %c0_i32_0, %c0_i32_1 : i32, i32, i32
  }
  func.func @transform_1(%arg0: i32) -> (i32, i32) {
    %c0_i32 = arith.constant 0 : i32
    %c0_i32_0 = arith.constant 0 : i32
    %c0_i32_1 = arith.constant 0 : i32
    return %c0_i32, %c0_i32_0 : i32, i32
  }
  func.func @transform_2(%arg0: i32) -> (i32, i32) {
    %c0_i32 = arith.constant 0 : i32
    %c0_i32_0 = arith.constant 0 : i32
    %c0_i32_1 = arith.constant 0 : i32
    return %c0_i32, %c0_i32_0 : i32, i32
  }
  func.func @transform_3(%arg0: i32) -> (i32, i32) {
    %c0_i32 = arith.constant 0 : i32
    %c0_i32_0 = arith.constant 0 : i32
    %c0_i32_1 = arith.constant 0 : i32
    return %c0_i32, %c0_i32_0 : i32, i32
  }
  func.func @transform_4(%arg0: i32) -> (i32, i32) {
    %c0_i32 = arith.constant 0 : i32
    %c0_i32_0 = arith.constant 0 : i32
    %c0_i32_1 = arith.constant 0 : i32
    return %c0_i32, %c0_i32_0 : i32, i32
  }
  func.func @transform_5(%arg0: i32) -> (i32, i32) {
    %c0_i32 = arith.constant 0 : i32
    %c0_i32_0 = arith.constant 0 : i32
    %c0_i32_1 = arith.constant 0 : i32
    return %c0_i32, %c0_i32_0 : i32, i32
  }
  func.func @transform_6(%arg0: i32) -> (i32, i32) {
    %c0_i32 = arith.constant 0 : i32
    %c0_i32_0 = arith.constant 0 : i32
    %c0_i32_1 = arith.constant 0 : i32
    return %c0_i32, %c0_i32_0 : i32, i32
  }
  func.func @transform_7(%arg0: i32) -> (i32, i32) {
    %c0_i32 = arith.constant 0 : i32
    %c0_i32_0 = arith.constant 0 : i32
    %c0_i32_1 = arith.constant 0 : i32
    return %c0_i32, %c0_i32_0 : i32, i32
  }
  func.func @transform_8(%arg0: i32) -> (i32, i32) {
    %c0_i32 = arith.constant 0 : i32
    %c0_i32_0 = arith.constant 0 : i32
    %c0_i32_1 = arith.constant 0 : i32
    return %c0_i32, %c0_i32_0 : i32, i32
  }
  func.func @transform_9(%arg0: i32) -> (i32, i32) {
    %c0_i32 = arith.constant 0 : i32
    %c0_i32_0 = arith.constant 0 : i32
    %c0_i32_1 = arith.constant 0 : i32
    return %c0_i32, %c0_i32_0 : i32, i32
  }
}

</mosaic_0001>

<llo_original>
// kernel: mul.18
$region0: #{mul.18}
  %s0 = inlined_call_operand.vmem [shape: f32[3,3,10], index: 0, kind: input, shape index: {}]
  %s1 = inlined_call_operand.vmem [shape: f32[9,10], index: 1, kind: output, shape index: {}]
  $region1: #{mul.18} parent=0
    #allocation0 [shape = 'u8[12288]{0}', space=vmem, size = 0x3000, scoped, tag = 'scoped mem for input reshape']
    %s3 = ssub.s32 16, 1
    %s4 = scalar_lea.vmem %s0, 8
    %v5 = vld [vmem:[%s4] sm:%s3]
    %s6 = scalar_lea.vmem [#allocation0], 16
    %7 = vst [vmem:[%s6] sm:%s3] %v5
    %s8 = scalar_lea.vmem %s0, 4
    %v9 = vld [vmem:[%s8] sm:%s3]
    %s10 = scalar_lea.vmem [#allocation0], 8
    %11 = vst [vmem:[%s10] sm:%s3] %v9
    %v12 = vld [vmem:[%s0] sm:%s3]
    %13 = vst [vmem:[#allocation0] sm:%s3] %v12
    %v14 = vld [vmem:[#allocation0] sm:$0x7]
    %vm15 = vcmask 80896
    %16 = vst.msk [vmem:[%s1] sm:$0x7] %vm15, %v14
    %s17 = scalar_lea.vmem [#allocation0], 8
    %v18 = vld [vmem:[%s17] sm:$0x7]
    %vm19 = vcmask 80896
    %s20 = scalar_lea.vmem %s1, 3
    %21 = vst.msk [vmem:[%s20] sm:$0x7] %vm19, %v18
    %s22 = scalar_lea.vmem [#allocation0], 16
    %v23 = vld [vmem:[%s22] sm:$0x7]
    %vm24 = vcmask 80896
    %s25 = scalar_lea.vmem %s1, 6
    %26 = vst.msk [vmem:[%s25] sm:$0x7] %vm24, %v23

// kernel: representation_network_pallas.3
$region0: #{representation_network_pallas.3}
  #allocation0 [shape = 'u32[]', space=smem, size = 0x4, offset = 0x4, fixed_abs, tag = 'smem constant byte address 0x4 - core index']
  #allocation1 [shape = 'u32[72,128]{1,0:T(1,128)}', space=vmem, size = 0x9000, scoped, tag = 'internal scratch']
  %s0 = inlined_call_operand.vmem [shape: f32[2,3,30], index: 0, kind: input, shape index: {}]
  %s1 = inlined_call_operand.vmem [shape: f32[2,30], index: 1, kind: input, shape index: {}]
  %s2 = inlined_call_operand.vmem [shape: f32[30,200], index: 2, kind: input, shape index: {}]
  %s3 = inlined_call_operand.vmem [shape: f32[30,200], index: 3, kind: input, shape index: {}]
  %s4 = inlined_call_operand.vmem [shape: f32[1,200], index: 4, kind: input, shape index: {}]
  %s5 = inlined_call_operand.vmem [shape: f32[200,200], index: 5, kind: input, shape index: {}]
  %s6 = inlined_call_operand.vmem [shape: f32[1,200], index: 6, kind: input, shape index: {}]
  %s7 = inlined_call_operand.vmem [shape: f32[200,200], index: 7, kind: input, shape index: {}]
  %s8 = inlined_call_operand.vmem [shape: f32[1,200], index: 8, kind: input, shape index: {}]
  %s9 = inlined_call_operand.hbm [shape: f32[2,200], index: 9, kind: output, shape index: {}]
  %s10 = sld [smem:[#allocation0]]
  $region46: #{representation_network_pallas.3} parent=0
    _
  %s12 = ssub.s32 1, %s10
  %s13 = scalar_select 0, %s12, %s10
  $region1: #{representation_network_pallas.3} parent=0
    #allocation2 [shape = 'u8[2048]{0}', space=vmem, size = 0x800, scoped, tag = 'output window, operand 0, single buffered']
    #allocation3 [shape = 's32[1]{0}', space=sflag, size = 0x4, scoped, tag = 'scoped memory for representation_network_pallas.3']
    %14 = vsyncpa [#allocation3], 0
    // Predicated region
    $region2: #{representation_network_pallas.3} parent=1 // pred_check
      _
    $region3: #{representation_network_pallas.3} parent=1 // pred_check_branch
      %16 = sbr.rel (0) target = $region5
    $region4: #{representation_network_pallas.3} parent=1 // pred_region
      _
    $region5: #{representation_network_pallas.3} parent=1 // pred_fallthru
      _
    // Predicated region
    $region6: #{representation_network_pallas.3} parent=1 // pred_check
      _
    $region7: #{representation_network_pallas.3} parent=1 // pred_check_branch
      %18 = sbr.rel (0) target = $region9
    $region8: #{representation_network_pallas.3} parent=1 // pred_region
      _
    $region9: #{representation_network_pallas.3} parent=1 // pred_fallthru
      _
    // Predicated region
    $region10: #{representation_network_pallas.3} parent=1 // pred_check
      _
    $region11: #{representation_network_pallas.3} parent=1 // pred_check_branch
      %20 = sbr.rel (0) target = $region13
    $region12: #{representation_network_pallas.3} parent=1 // pred_region
      _
    $region13: #{representation_network_pallas.3} parent=1 // pred_fallthru
      _
    // Predicated region
    $region14: #{representation_network_pallas.3} parent=1 // pred_check
      _
    $region15: #{representation_network_pallas.3} parent=1 // pred_check_branch
      %22 = sbr.rel (0) target = $region17
    $region16: #{representation_network_pallas.3} parent=1 // pred_region
      _
    $region17: #{representation_network_pallas.3} parent=1 // pred_fallthru
      _
    // Predicated region
    $region18: #{representation_network_pallas.3} parent=1 // pred_check
      _
    $region19: #{representation_network_pallas.3} parent=1 // pred_check_branch
      %24 = sbr.rel (0) target = $region21
    $region20: #{representation_network_pallas.3} parent=1 // pred_region
      _
    $region21: #{representation_network_pallas.3} parent=1 // pred_fallthru
      _
    // Predicated region
    $region22: #{representation_network_pallas.3} parent=1 // pred_check
      _
    $region23: #{representation_network_pallas.3} parent=1 // pred_check_branch
      %26 = sbr.rel (0) target = $region25
    $region24: #{representation_network_pallas.3} parent=1 // pred_region
      _
    $region25: #{representation_network_pallas.3} parent=1 // pred_fallthru
      _
    // Predicated region
    $region26: #{representation_network_pallas.3} parent=1 // pred_check
      _
    $region27: #{representation_network_pallas.3} parent=1 // pred_check_branch
      %28 = sbr.rel (0) target = $region29
    $region28: #{representation_network_pallas.3} parent=1 // pred_region
      _
    $region29: #{representation_network_pallas.3} parent=1 // pred_fallthru
      _
    // Predicated region
    $region30: #{representation_network_pallas.3} parent=1 // pred_check
      _
    $region31: #{representation_network_pallas.3} parent=1 // pred_check_branch
      %30 = sbr.rel (0) target = $region33
    $region32: #{representation_network_pallas.3} parent=1 // pred_region
      _
    $region33: #{representation_network_pallas.3} parent=1 // pred_fallthru
      _
    // Predicated region
    $region34: #{representation_network_pallas.3} parent=1 // pred_check
      _
    $region35: #{representation_network_pallas.3} parent=1 // pred_check_branch
      %32 = sbr.rel (0) target = $region37
    $region36: #{representation_network_pallas.3} parent=1 // pred_region
      _
    $region37: #{representation_network_pallas.3} parent=1 // pred_fallthru
      _
    %v33 = vld [vmem:[%s0] sm:$0x7]
    %v34 = vld [vmem:[%s0 + $0x4] sm:$0x7]
    %vm35 = vcmask 239616
    %v36 = vsel %vm35, %v33, 0.0
    %v37 = vrot.slane %v36, 4
    %v38 = vadd.f32 %v36, %v37
    %v39 = vrot.slane %v38, 2
    %v40 = vadd.f32 %v38, %v39
    %v41 = vrot.slane %v40, 1
    %v42 = vadd.f32 %v40, %v41
    %v43 = vsel %vm35, %v34, 0.0
    %v44 = vrot.slane %v43, 4
    %v45 = vadd.f32 %v43, %v44
    %v46 = vrot.slane %v45, 2
    %v47 = vadd.f32 %v45, %v46
    %v48 = vrot.slane %v47, 1
    %v49 = vadd.f32 %v47, %v48
    %v50 = vld [vmem:[%s2] sm:$0xff]
    %v51 = vld [vmem:[%s2 + $0x8] sm:$0xff]
    %v52 = vld [vmem:[%s2 + $0x10] sm:$0xff]
    %v53 = vld [vmem:[%s2 + $0x18] sm:$0xff]
    %v54 = vld [vmem:[%s2 + $0x20] sm:$0xff]
    %v55 = vld [vmem:[%s2 + $0x28] sm:$0xff]
    %v56 = vld [vmem:[%s2 + $0x30] sm:$0x3f]
    %v57 = vld [vmem:[%s2 + $0x38] sm:$0x3f]
    %v58 = vld [vmem:[%s1] sm:$0x3]
    %v59 = vld [vmem:[%s3] sm:$0xff]
    %v60 = vld [vmem:[%s3 + $0x8] sm:$0xff]
    %v61 = vld [vmem:[%s3 + $0x10] sm:$0xff]
    %v62 = vld [vmem:[%s3 + $0x18] sm:$0xff]
    %v63 = vld [vmem:[%s3 + $0x20] sm:$0xff]
    %v64 = vld [vmem:[%s3 + $0x28] sm:$0xff]
    %v65 = vld [vmem:[%s3 + $0x30] sm:$0x3f]
    %v66 = vld [vmem:[%s3 + $0x38] sm:$0x3f]
    %vm67 = vcmask 244736
    %v69 = vsel %vm67, %v58, 0
    %vm71 = vcmask 1045504
    %v73 = vsel %vm71, %v65, 0
    %v76 = vsel %vm71, %v66, 0
    %78 = vmatpush.msra.mxu0 0.0
    %79 = vmatpush.msra.mxu0 0.0
    %80 = vmatpush.msra.mxu0 0.0
    %81 = vmatpush.msra.mxu0 0.0
    %82 = vmatpush.msra.mxu0 0.0
    %83 = vmatpush.msra.mxu0 0.0
    %84 = vmatpush.msra.mxu0 0.0
    %85 = vmatpush.msra.mxu0 0.0
    %86 = vmatpush.msra.mxu0 0.0
    %87 = vmatpush.msra.mxu0 0.0
    %88 = vmatpush.msra.mxu0 0.0
    %89 = vmatpush.msra.mxu0 0.0
    %90 = vmatpush.msra.mxu0 %v73
    %91 = vmatpush.msra.mxu0 %v63
    %92 = vmatpush.msra.mxu0 %v61
    %93 = vmatpush.msra.mxu0 %v59
    %94 = vmatmul.f32.gmra.mxu0 %v69
    %v95 = vpop.f32.mrf.mxu0
    %v96 = vadd.f32 0.0, %v95
    %97 = vdwg.mxu0
    %98 = vmatpush.msra.mxu0 0.0
    %99 = vmatpush.msra.mxu0 0.0
    %100 = vmatpush.msra.mxu0 0.0
    %101 = vmatpush.msra.mxu0 0.0
    %102 = vmatpush.msra.mxu0 0.0
    %103 = vmatpush.msra.mxu0 0.0
    %104 = vmatpush.msra.mxu0 0.0
    %105 = vmatpush.msra.mxu0 0.0
    %106 = vmatpush.msra.mxu0 0.0
    %107 = vmatpush.msra.mxu0 0.0
    %108 = vmatpush.msra.mxu0 0.0
    %109 = vmatpush.msra.mxu0 0.0
    %110 = vmatpush.msra.mxu0 %v76
    %111 = vmatpush.msra.mxu0 %v64
    %112 = vmatpush.msra.mxu0 %v62
    %113 = vmatpush.msra.mxu0 %v60
    %114 = vmatmul.f32.gmra.mxu0 %v69
    %v115 = vpop.f32.mrf.mxu0
    %v116 = vadd.f32 0.0, %v115
    %117 = vdwg.mxu0
    %vm120 = vcmask 1041409
    %v121 = vsel %vm120, %v49, %v42
    %v122 = vsel %vm67, %v121, 0
    %v125 = vsel %vm71, %v56, 0
    %v128 = vsel %vm71, %v57, 0
    %130 = vmatpush.msra.mxu0 0.0
    %131 = vmatpush.msra.mxu0 0.0
    %132 = vmatpush.msra.mxu0 0.0
    %133 = vmatpush.msra.mxu0 0.0
    %134 = vmatpush.msra.mxu0 0.0
    %135 = vmatpush.msra.mxu0 0.0
    %136 = vmatpush.msra.mxu0 0.0
    %137 = vmatpush.msra.mxu0 0.0
    %138 = vmatpush.msra.mxu0 0.0
    %139 = vmatpush.msra.mxu0 0.0
    %140 = vmatpush.msra.mxu0 0.0
    %141 = vmatpush.msra.mxu0 0.0
    %142 = vmatpush.msra.mxu0 %v125
    %143 = vmatpush.msra.mxu0 %v54
    %144 = vmatpush.msra.mxu0 %v52
    %145 = vmatpush.msra.mxu0 %v50
    %146 = vmatmul.f32.gmra.mxu0 %v122
    %v147 = vpop.f32.mrf.mxu0
    %v148 = vadd.f32 %v96, %v147
    %149 = vdwg.mxu0
    %150 = vmatpush.msra.mxu0 0.0
    %151 = vmatpush.msra.mxu0 0.0
    %152 = vmatpush.msra.mxu0 0.0
    %153 = vmatpush.msra.mxu0 0.0
    %154 = vmatpush.msra.mxu0 0.0
    %155 = vmatpush.msra.mxu0 0.0
    %156 = vmatpush.msra.mxu0 0.0
    %157 = vmatpush.msra.mxu0 0.0
    %158 = vmatpush.msra.mxu0 0.0
    %159 = vmatpush.msra.mxu0 0.0
    %160 = vmatpush.msra.mxu0 0.0
    %161 = vmatpush.msra.mxu0 0.0
    %162 = vmatpush.msra.mxu0 %v128
    %163 = vmatpush.msra.mxu0 %v55
    %164 = vmatpush.msra.mxu0 %v53
    %165 = vmatpush.msra.mxu0 %v51
    %166 = vmatmul.f32.gmra.mxu0 %v122
    %v167 = vpop.f32.mrf.mxu0
    %v168 = vadd.f32 %v116, %v167
    %169 = vdwg.mxu0
    %v170 = vld [vmem:[%s4] sm:$0x3]
    %v172 = vperm.slane %v170, 0
    %v173 = vperm.slane %v170, 1
    %v176 = vadd.f32 %v148, %v172
    %v177 = vadd.f32 %v168, %v173
    %v178 = vmax.f32 %v176, 0.0
    %v179 = vmax.f32 %v177, 0.0
    %v180 = vld [vmem:[%s5] sm:$0xff]
    %v181 = vld [vmem:[%s5 + $0x8] sm:$0xff]
    %v182 = vld [vmem:[%s5 + $0x10] sm:$0xff]
    %v183 = vld [vmem:[%s5 + $0x18] sm:$0xff]
    %v184 = vld [vmem:[%s5 + $0x20] sm:$0xff]
    %v185 = vld [vmem:[%s5 + $0x28] sm:$0xff]
    %v186 = vld [vmem:[%s5 + $0x30] sm:$0xff]
    %v187 = vld [vmem:[%s5 + $0x38] sm:$0xff]
    %v188 = vld [vmem:[%s5 + $0x40] sm:$0xff]
    %v189 = vld [vmem:[%s5 + $0x48] sm:$0xff]
    %v190 = vld [vmem:[%s5 + $0x50] sm:$0xff]
    %v191 = vld [vmem:[%s5 + $0x58] sm:$0xff]
    %v192 = vld [vmem:[%s5 + $0x60] sm:$0xff]
    %v193 = vld [vmem:[%s5 + $0x68] sm:$0xff]
    %v194 = vld [vmem:[%s5 + $0x70] sm:$0xff]
    %v195 = vld [vmem:[%s5 + $0x78] sm:$0xff]
    %v196 = vld [vmem:[%s5 + $0x80] sm:$0xff]
    %v197 = vld [vmem:[%s5 + $0x88] sm:$0xff]
    %v198 = vld [vmem:[%s5 + $0x90] sm:$0xff]
    %v199 = vld [vmem:[%s5 + $0x98] sm:$0xff]
    %v200 = vld [vmem:[%s5 + $0xa0] sm:$0xff]
    %v201 = vld [vmem:[%s5 + $0xa8] sm:$0xff]
    %v202 = vld [vmem:[%s5 + $0xb0] sm:$0xff]
    %v203 = vld [vmem:[%s5 + $0xb8] sm:$0xff]
    %v204 = vld [vmem:[%s5 + $0xc0] sm:$0xff]
    %v205 = vld [vmem:[%s5 + $0xc8] sm:$0xff]
    %v206 = vld [vmem:[%s5 + $0xd0] sm:$0xff]
    %v207 = vld [vmem:[%s5 + $0xd8] sm:$0xff]
    %v208 = vld [vmem:[%s5 + $0xe0] sm:$0xff]
    %v209 = vld [vmem:[%s5 + $0xe8] sm:$0xff]
    %v210 = vld [vmem:[%s5 + $0xf0] sm:$0xff]
    %v211 = vld [vmem:[%s5 + $0xf8] sm:$0xff]
    %v212 = vld [vmem:[%s5 + $0x100] sm:$0xff]
    %v213 = vld [vmem:[%s5 + $0x108] sm:$0xff]
    %v214 = vld [vmem:[%s5 + $0x110] sm:$0xff]
    %v215 = vld [vmem:[%s5 + $0x118] sm:$0xff]
    %v216 = vld [vmem:[%s5 + $0x120] sm:$0xff]
    %v217 = vld [vmem:[%s5 + $0x128] sm:$0xff]
    %v218 = vld [vmem:[%s5 + $0x130] sm:$0xff]
    %v219 = vld [vmem:[%s5 + $0x138] sm:$0xff]
    %v220 = vld [vmem:[%s5 + $0x140] sm:$0xff]
    %v221 = vld [vmem:[%s5 + $0x148] sm:$0xff]
    %v222 = vld [vmem:[%s5 + $0x150] sm:$0xff]
    %v223 = vld [vmem:[%s5 + $0x158] sm:$0xff]
    %v224 = vld [vmem:[%s5 + $0x160] sm:$0xff]
    %v225 = vld [vmem:[%s5 + $0x168] sm:$0xff]
    %v226 = vld [vmem:[%s5 + $0x170] sm:$0xff]
    %v227 = vld [vmem:[%s5 + $0x178] sm:$0xff]
    %v228 = vld [vmem:[%s5 + $0x180] sm:$0xff]
    %v229 = vld [vmem:[%s5 + $0x188] sm:$0xff]
    %v230 = vld [vmem:[%s6] sm:$0x3]
    %v232 = vperm.slane %v230, 0
    %v233 = vperm.slane %v230, 1
    %vm236 = vcmask 588800
    %v238 = vsel %vm236, %v179, 0
    %240 = vmatpush.msra.mxu0 %v210
    %241 = vmatpush.msra.mxu0 %v208
    %242 = vmatpush.msra.mxu0 %v206
    %243 = vmatpush.msra.mxu0 %v204
    %244 = vmatpush.msra.mxu0 %v202
    %245 = vmatpush.msra.mxu0 %v200
    %246 = vmatpush.msra.mxu0 %v198
    %247 = vmatpush.msra.mxu0 %v196
    %248 = vmatpush.msra.mxu0 %v194
    %249 = vmatpush.msra.mxu0 %v192
    %250 = vmatpush.msra.mxu0 %v190
    %251 = vmatpush.msra.mxu0 %v188
    %252 = vmatpush.msra.mxu0 %v186
    %253 = vmatpush.msra.mxu0 %v184
    %254 = vmatpush.msra.mxu0 %v182
    %255 = vmatpush.msra.mxu0 %v180
    %256 = vmatmul.f32.gmra.mxu0 %v178
    %v257 = vpop.f32.mrf.mxu0
    %v258 = vadd.f32 %v232, %v257
    %259 = vdwg.mxu0
    %260 = vmatpush.msra.mxu0 0.0
    %261 = vmatpush.msra.mxu0 0.0
    %262 = vmatpush.msra.mxu0 0.0
    %263 = vmatpush.msra.mxu0 0.0
    %264 = vmatpush.msra.mxu0 0.0
    %265 = vmatpush.msra.mxu0 0.0
    %266 = vmatpush.msra.mxu0 0.0
    %267 = vmatpush.msra.mxu0 %v228
    %268 = vmatpush.msra.mxu0 %v226
    %269 = vmatpush.msra.mxu0 %v224
    %270 = vmatpush.msra.mxu0 %v222
    %271 = vmatpush.msra.mxu0 %v220
    %272 = vmatpush.msra.mxu0 %v218
    %273 = vmatpush.msra.mxu0 %v216
    %274 = vmatpush.msra.mxu0 %v214
    %275 = vmatpush.msra.mxu0 %v212
    %276 = vmatmul.f32.gmra.mxu0 %v238
    %v277 = vpop.f32.mrf.mxu0
    %v278 = vadd.f32 %v258, %v277
    %279 = vdwg.mxu0
    %280 = vmatpush.msra.mxu0 %v211
    %281 = vmatpush.msra.mxu0 %v209
    %282 = vmatpush.msra.mxu0 %v207
    %283 = vmatpush.msra.mxu0 %v205
    %284 = vmatpush.msra.mxu0 %v203
    %285 = vmatpush.msra.mxu0 %v201
    %286 = vmatpush.msra.mxu0 %v199
    %287 = vmatpush.msra.mxu0 %v197
    %288 = vmatpush.msra.mxu0 %v195
    %289 = vmatpush.msra.mxu0 %v193
    %290 = vmatpush.msra.mxu0 %v191
    %291 = vmatpush.msra.mxu0 %v189
    %292 = vmatpush.msra.mxu0 %v187
    %293 = vmatpush.msra.mxu0 %v185
    %294 = vmatpush.msra.mxu0 %v183
    %295 = vmatpush.msra.mxu0 %v181
    %296 = vmatmul.f32.gmra.mxu0 %v178
    %v297 = vpop.f32.mrf.mxu0
    %v298 = vadd.f32 %v233, %v297
    %299 = vdwg.mxu0
    %300 = vmatpush.msra.mxu0 0.0
    %301 = vmatpush.msra.mxu0 0.0
    %302 = vmatpush.msra.mxu0 0.0
    %303 = vmatpush.msra.mxu0 0.0
    %304 = vmatpush.msra.mxu0 0.0
    %305 = vmatpush.msra.mxu0 0.0
    %306 = vmatpush.msra.mxu0 0.0
    %307 = vmatpush.msra.mxu0 %v229
    %308 = vmatpush.msra.mxu0 %v227
    %309 = vmatpush.msra.mxu0 %v225
    %310 = vmatpush.msra.mxu0 %v223
    %311 = vmatpush.msra.mxu0 %v221
    %312 = vmatpush.msra.mxu0 %v219
    %313 = vmatpush.msra.mxu0 %v217
    %314 = vmatpush.msra.mxu0 %v215
    %315 = vmatpush.msra.mxu0 %v213
    %316 = vmatmul.f32.gmra.mxu0 %v238
    %v317 = vpop.f32.mrf.mxu0
    %v318 = vadd.f32 %v298, %v317
    %319 = vdwg.mxu0
    %v320 = vmax.f32 %v278, 0.0
    %v321 = vmax.f32 %v318, 0.0
    %v322 = vld [vmem:[%s7] sm:$0xff]
    %v323 = vld [vmem:[%s7 + $0x8] sm:$0xff]
    %v324 = vld [vmem:[%s7 + $0x10] sm:$0xff]
    %v325 = vld [vmem:[%s7 + $0x18] sm:$0xff]
    %v326 = vld [vmem:[%s7 + $0x20] sm:$0xff]
    %v327 = vld [vmem:[%s7 + $0x28] sm:$0xff]
    %v328 = vld [vmem:[%s7 + $0x30] sm:$0xff]
    %v329 = vld [vmem:[%s7 + $0x38] sm:$0xff]
    %v330 = vld [vmem:[%s7 + $0x40] sm:$0xff]
    %v331 = vld [vmem:[%s7 + $0x48] sm:$0xff]
    %v332 = vld [vmem:[%s7 + $0x50] sm:$0xff]
    %v333 = vld [vmem:[%s7 + $0x58] sm:$0xff]
    %v334 = vld [vmem:[%s7 + $0x60] sm:$0xff]
    %v335 = vld [vmem:[%s7 + $0x68] sm:$0xff]
    %v336 = vld [vmem:[%s7 + $0x70] sm:$0xff]
    %v337 = vld [vmem:[%s7 + $0x78] sm:$0xff]
    %v338 = vld [vmem:[%s7 + $0x80] sm:$0xff]
    %v339 = vld [vmem:[%s7 + $0x88] sm:$0xff]
    %v340 = vld [vmem:[%s7 + $0x90] sm:$0xff]
    %v341 = vld [vmem:[%s7 + $0x98] sm:$0xff]
    %v342 = vld [vmem:[%s7 + $0xa0] sm:$0xff]
    %v343 = vld [vmem:[%s7 + $0xa8] sm:$0xff]
    %v344 = vld [vmem:[%s7 + $0xb0] sm:$0xff]
    %v345 = vld [vmem:[%s7 + $0xb8] sm:$0xff]
    %v346 = vld [vmem:[%s7 + $0xc0] sm:$0xff]
    %v347 = vld [vmem:[%s7 + $0xc8] sm:$0xff]
    %v348 = vld [vmem:[%s7 + $0xd0] sm:$0xff]
    %v349 = vld [vmem:[%s7 + $0xd8] sm:$0xff]
    %v350 = vld [vmem:[%s7 + $0xe0] sm:$0xff]
    %v351 = vld [vmem:[%s7 + $0xe8] sm:$0xff]
    %v352 = vld [vmem:[%s7 + $0xf0] sm:$0xff]
    %v353 = vld [vmem:[%s7 + $0xf8] sm:$0xff]
    %v354 = vld [vmem:[%s7 + $0x100] sm:$0xff]
    %v355 = vld [vmem:[%s7 + $0x108] sm:$0xff]
    %v356 = vld [vmem:[%s7 + $0x110] sm:$0xff]
    %v357 = vld [vmem:[%s7 + $0x118] sm:$0xff]
    %v358 = vld [vmem:[%s7 + $0x120] sm:$0xff]
    %v359 = vld [vmem:[%s7 + $0x128] sm:$0xff]
    %v360 = vld [vmem:[%s7 + $0x130] sm:$0xff]
    %v361 = vld [vmem:[%s7 + $0x138] sm:$0xff]
    %v362 = vld [vmem:[%s7 + $0x140] sm:$0xff]
    %v363 = vld [vmem:[%s7 + $0x148] sm:$0xff]
    %v364 = vld [vmem:[%s7 + $0x150] sm:$0xff]
    %v365 = vld [vmem:[%s7 + $0x158] sm:$0xff]
    %v366 = vld [vmem:[%s7 + $0x160] sm:$0xff]
    %v367 = vld [vmem:[%s7 + $0x168] sm:$0xff]
    %v368 = vld [vmem:[%s7 + $0x170] sm:$0xff]
    %v369 = vld [vmem:[%s7 + $0x178] sm:$0xff]
    %v370 = vld [vmem:[%s7 + $0x180] sm:$0xff]
    %v371 = vld [vmem:[%s7 + $0x188] sm:$0xff]
    %v372 = vld [vmem:[%s8] sm:$0x3]
    %v374 = vperm.slane %v372, 0
    %v375 = vperm.slane %v372, 1
    %v379 = vsel %vm236, %v321, 0
    %381 = vmatpush.msra.mxu0 %v352
    %382 = vmatpush.msra.mxu0 %v350
    %383 = vmatpush.msra.mxu0 %v348
    %384 = vmatpush.msra.mxu0 %v346
    %385 = vmatpush.msra.mxu0 %v344
    %386 = vmatpush.msra.mxu0 %v342
    %387 = vmatpush.msra.mxu0 %v340
    %388 = vmatpush.msra.mxu0 %v338
    %389 = vmatpush.msra.mxu0 %v336
    %390 = vmatpush.msra.mxu0 %v334
    %391 = vmatpush.msra.mxu0 %v332
    %392 = vmatpush.msra.mxu0 %v330
    %393 = vmatpush.msra.mxu0 %v328
    %394 = vmatpush.msra.mxu0 %v326
    %395 = vmatpush.msra.mxu0 %v324
    %396 = vmatpush.msra.mxu0 %v322
    %397 = vmatmul.f32.gmra.mxu0 %v320
    %v398 = vpop.f32.mrf.mxu0
    %v399 = vadd.f32 %v374, %v398
    %400 = vdwg.mxu0
    %401 = vmatpush.msra.mxu0 0.0
    %402 = vmatpush.msra.mxu0 0.0
    %403 = vmatpush.msra.mxu0 0.0
    %404 = vmatpush.msra.mxu0 0.0
    %405 = vmatpush.msra.mxu0 0.0
    %406 = vmatpush.msra.mxu0 0.0
    %407 = vmatpush.msra.mxu0 0.0
    %408 = vmatpush.msra.mxu0 %v370
    %409 = vmatpush.msra.mxu0 %v368
    %410 = vmatpush.msra.mxu0 %v366
    %411 = vmatpush.msra.mxu0 %v364
    %412 = vmatpush.msra.mxu0 %v362
    %413 = vmatpush.msra.mxu0 %v360
    %414 = vmatpush.msra.mxu0 %v358
    %415 = vmatpush.msra.mxu0 %v356
    %416 = vmatpush.msra.mxu0 %v354
    %417 = vmatmul.f32.gmra.mxu0 %v379
    %v418 = vpop.f32.mrf.mxu0
    %v419 = vadd.f32 %v399, %v418
    %420 = vdwg.mxu0
    %421 = vmatpush.msra.mxu0 %v353
    %422 = vmatpush.msra.mxu0 %v351
    %423 = vmatpush.msra.mxu0 %v349
    %424 = vmatpush.msra.mxu0 %v347
    %425 = vmatpush.msra.mxu0 %v345
    %426 = vmatpush.msra.mxu0 %v343
    %427 = vmatpush.msra.mxu0 %v341
    %428 = vmatpush.msra.mxu0 %v339
    %429 = vmatpush.msra.mxu0 %v337
    %430 = vmatpush.msra.mxu0 %v335
    %431 = vmatpush.msra.mxu0 %v333
    %432 = vmatpush.msra.mxu0 %v331
    %433 = vmatpush.msra.mxu0 %v329
    %434 = vmatpush.msra.mxu0 %v327
    %435 = vmatpush.msra.mxu0 %v325
    %436 = vmatpush.msra.mxu0 %v323
    %437 = vmatmul.f32.gmra.mxu0 %v320
    %v438 = vpop.f32.mrf.mxu0
    %v439 = vadd.f32 %v375, %v438
    %440 = vdwg.mxu0
    %441 = vmatpush.msra.mxu0 0.0
    %442 = vmatpush.msra.mxu0 0.0
    %443 = vmatpush.msra.mxu0 0.0
    %444 = vmatpush.msra.mxu0 0.0
    %445 = vmatpush.msra.mxu0 0.0
    %446 = vmatpush.msra.mxu0 0.0
    %447 = vmatpush.msra.mxu0 0.0
    %448 = vmatpush.msra.mxu0 %v371
    %449 = vmatpush.msra.mxu0 %v369
    %450 = vmatpush.msra.mxu0 %v367
    %451 = vmatpush.msra.mxu0 %v365
    %452 = vmatpush.msra.mxu0 %v363
    %453 = vmatpush.msra.mxu0 %v361
    %454 = vmatpush.msra.mxu0 %v359
    %455 = vmatpush.msra.mxu0 %v357
    %456 = vmatpush.msra.mxu0 %v355
    %457 = vmatmul.f32.gmra.mxu0 %v379
    %v458 = vpop.f32.mrf.mxu0
    %v459 = vadd.f32 %v439, %v458
    %460 = vdwg.mxu0
    %v461 = vtanh.pop %v419
    %v462 = vtanh.pop %v459
    %v465 = vrot.slane %v462, 6
    %vm466 = vcmask 1041408
    %v467 = vsel %vm466, %v461, %v465
    %vm469 = vcmask 584706
    %vm470 = vmor %vm469, %vm466
    %471 = vst.msk [vmem:[#allocation2] sm:$0xf] %vm470, %v467
    // Predicated region
    $region38: #{representation_network_pallas.3} parent=1 // pred_check
      _
    $region39: #{representation_network_pallas.3} parent=1 // pred_check_branch
      %473 = sbr.rel (0) target = $region41
    $region40: #{representation_network_pallas.3} parent=1 // pred_region
      %475 = vsyncadd [#allocation3], 0
      %s477 = sshll.u32 [#allocation2], 4
      %s478 = int_to_ptr.vmem [resolvable:$true] %s477
      %s479 = sshll.u32 %s9, 4
      %s480 = int_to_ptr.hbm [resolvable:$true] %s479
      %482 = dma.vmem_to_hbm [thread:$0]  %s478, 64, %s480, [#allocation3]
    $region41: #{representation_network_pallas.3} parent=1 // pred_fallthru
      _
    // Predicated region
    $region42: #{representation_network_pallas.3} parent=1 // pred_check
      _
    $region43: #{representation_network_pallas.3} parent=1 // pred_check_branch
      %484 = sbr.rel (0) target = $region45
    $region44: #{representation_network_pallas.3} parent=1 // pred_region
      %486 = dma.done [#allocation3], 64
    $region45: #{representation_network_pallas.3} parent=1 // pred_fallthru
      _
    %487 = vsyncpa [#allocation3], 1

// kernel: representation_network_pallas.2
$region0: #{representation_network_pallas.2}
  #allocation0 [shape = 'u32[]', space=smem, size = 0x4, offset = 0x4, fixed_abs, tag = 'smem constant byte address 0x4 - core index']
  #allocation1 [shape = 'u32[72,128]{1,0:T(1,128)}', space=vmem, size = 0x9000, scoped, tag = 'internal scratch']
  #allocation2 [shape = 's32[1]{0}', space=sflag, size = 0x4, scoped, tag = 'scoped memory for representation_network_pallas.2']
  #allocation3 [shape = 'u8[512]{0}', space=smem, size = 0x200, scoped, tag = 'prefetched SMEM operand 0']
  %s0 = inlined_call_operand.vmem [shape: s32[2], index: 0, kind: input, shape index: {}]
  %s1 = inlined_call_operand.vmem [shape: f32[16,576], index: 1, kind: input, shape index: {}]
  %s2 = inlined_call_operand.vmem [shape: f32[2,576,640], index: 2, kind: input, shape index: {}]
  %s3 = inlined_call_operand.vmem [shape: f32[2,1,160], index: 3, kind: input, shape index: {}]
  %s4 = inlined_call_operand.vmem [shape: f32[2,160,120], index: 4, kind: input, shape index: {}]
  %s5 = inlined_call_operand.vmem [shape: f32[2,1,30], index: 5, kind: input, shape index: {}]
  %s6 = inlined_call_operand.vmem [shape: f32[16,30], index: 6, kind: output, shape index: {}]
  %s7 = sld [smem:[#allocation0]]
  $region53: #{representation_network_pallas.2} parent=0
    _
  %s9 = ssub.s32 1, %s7
  %s10 = scalar_select 0, %s9, %s7
  %s12 = sshll.u32 %s0, 4
  %s13 = int_to_ptr.vmem [resolvable:$true] %s12
  %15 = dma.vmem_to_smem %s13, 16, [#allocation3], [#allocation2]
  %17 = dma.done [#allocation2], 16
  %18 = sfence
  loop: start=0, step=1, limit=4
  $region2: #{representation_network_pallas.2} parent=0 // loop_pre_header
    _
  $region3: #{representation_network_pallas.2} parent=0 // loop_header
    %s20 = sphi 0, %s24
    %p21 = scmp.ge.s32.totalorder %s20, 4
    %s30 = sphi 0, %s32
    %s33 = sphi 0, %s30
    %s34 = sphi 0, %s33
    %s50 = sphi 0, %s34
    %s58 = sphi 0, %s60
    %s61 = sphi 0, %s58
    %s62 = sphi 0, %s61
    %s78 = sphi 0, %s62
    %s86 = sphi 0, %s88
    %s89 = sphi 0, %s86
    %s90 = sphi 0, %s89
    %s106 = sphi 0, %s90
    %s114 = sphi 0, %s116
    %s117 = sphi 0, %s114
    %s118 = sphi 0, %s117
    %s134 = sphi 0, %s118
    %s142 = sphi 0, %s144
    %s145 = sphi 0, %s142
    %s146 = sphi 0, %s145
    %s162 = sphi 0, %s146
    %s168 = sphi 0, %s170
    %s171 = sphi 0, %s168
    %s172 = sphi 0, %s171
    %s188 = sphi 0, %s172
  $region4: #{representation_network_pallas.2} parent=0 // loop_header_branch
    %23 = sbr.rel (%p21) target = $region8
  $region5: #{representation_network_pallas.2} parent=0 // loop_body
    %s25 = ssub.s32 %s20, 1
    %s26 = ssub.s32 %s20, 2
    %s27 = sadd.s32 %s20, 1
    %s28 = ssub.s32 %s20, %s27
    %p29 = scmp.eq.s32.totalorder %s28, 0
    %s31 = sadd.s32 %s30, 1
    %s32 = scalar_select %p29, %s30, %s31
    %p35 = pneg %p29
    %p36 = scmp.eq.s32.totalorder %s20, 1
    %p37 = por %p35, %p36
    %p38 = scmp.ne.s32.totalorder %s30, %s33
    %p39 = scmp.eq.s32.totalorder %s20, 0
    %p40 = por %p38, %p39
    %p41 = scmp.ne.s32.totalorder %s30, %s33
    %p42 = scmp.eq.s32.totalorder %s25, 1
    %p43 = por %p41, %p42
    %p44 = scmp.ne.s32.totalorder %s33, %s34
    %p45 = scmp.eq.s32.totalorder %s25, 0
    %p46 = por %p44, %p45
    %p47 = scmp.ne.s32.totalorder %s33, %s34
    %p48 = scmp.eq.s32.totalorder %s26, 1
    %p49 = por %p47, %p48
    %p51 = scmp.ne.s32.totalorder %s34, %s50
    %p52 = scmp.eq.s32.totalorder %s26, 0
    %p53 = por %p51, %p52
    %s54 = sld [smem:[#allocation3 + %s20]]
    %s55 = sld [smem:[#allocation3 + %s27]]
    %s56 = ssub.s32 %s54, %s55
    %p57 = scmp.eq.s32.totalorder %s56, 0
    %s59 = sadd.s32 %s58, 1
    %s60 = scalar_select %p57, %s58, %s59
    %p63 = pneg %p57
    %p64 = scmp.eq.s32.totalorder %s20, 1
    %p65 = por %p63, %p64
    %p66 = scmp.ne.s32.totalorder %s58, %s61
    %p67 = scmp.eq.s32.totalorder %s20, 0
    %p68 = por %p66, %p67
    %p69 = scmp.ne.s32.totalorder %s58, %s61
    %p70 = scmp.eq.s32.totalorder %s25, 1
    %p71 = por %p69, %p70
    %p72 = scmp.ne.s32.totalorder %s61, %s62
    %p73 = scmp.eq.s32.totalorder %s25, 0
    %p74 = por %p72, %p73
    %p75 = scmp.ne.s32.totalorder %s61, %s62
    %p76 = scmp.eq.s32.totalorder %s26, 1
    %p77 = por %p75, %p76
    %p79 = scmp.ne.s32.totalorder %s62, %s78
    %p80 = scmp.eq.s32.totalorder %s26, 0
    %p81 = por %p79, %p80
    %s82 = sld [smem:[#allocation3 + %s20]]
    %s83 = sld [smem:[#allocation3 + %s27]]
    %s84 = ssub.s32 %s82, %s83
    %p85 = scmp.eq.s32.totalorder %s84, 0
    %s87 = sadd.s32 %s86, 1
    %s88 = scalar_select %p85, %s86, %s87
    %p91 = pneg %p85
    %p92 = scmp.eq.s32.totalorder %s20, 1
    %p93 = por %p91, %p92
    %p94 = scmp.ne.s32.totalorder %s86, %s89
    %p95 = scmp.eq.s32.totalorder %s20, 0
    %p96 = por %p94, %p95
    %p97 = scmp.ne.s32.totalorder %s86, %s89
    %p98 = scmp.eq.s32.totalorder %s25, 1
    %p99 = por %p97, %p98
    %p100 = scmp.ne.s32.totalorder %s89, %s90
    %p101 = scmp.eq.s32.totalorder %s25, 0
    %p102 = por %p100, %p101
    %p103 = scmp.ne.s32.totalorder %s89, %s90
    %p104 = scmp.eq.s32.totalorder %s26, 1
    %p105 = por %p103, %p104
    %p107 = scmp.ne.s32.totalorder %s90, %s106
    %p108 = scmp.eq.s32.totalorder %s26, 0
    %p109 = por %p107, %p108
    %s110 = sld [smem:[#allocation3 + %s20]]
    %s111 = sld [smem:[#allocation3 + %s27]]
    %s112 = ssub.s32 %s110, %s111
    %p113 = scmp.eq.s32.totalorder %s112, 0
    %s115 = sadd.s32 %s114, 1
    %s116 = scalar_select %p113, %s114, %s115
    %p119 = pneg %p113
    %p120 = scmp.eq.s32.totalorder %s20, 1
    %p121 = por %p119, %p120
    %p122 = scmp.ne.s32.totalorder %s114, %s117
    %p123 = scmp.eq.s32.totalorder %s20, 0
    %p124 = por %p122, %p123
    %p125 = scmp.ne.s32.totalorder %s114, %s117
    %p126 = scmp.eq.s32.totalorder %s25, 1
    %p127 = por %p125, %p126
    %p128 = scmp.ne.s32.totalorder %s117, %s118
    %p129 = scmp.eq.s32.totalorder %s25, 0
    %p130 = por %p128, %p129
    %p131 = scmp.ne.s32.totalorder %s117, %s118
    %p132 = scmp.eq.s32.totalorder %s26, 1
    %p133 = por %p131, %p132
    %p135 = scmp.ne.s32.totalorder %s118, %s134
    %p136 = scmp.eq.s32.totalorder %s26, 0
    %p137 = por %p135, %p136
    %s138 = sld [smem:[#allocation3 + %s20]]
    %s139 = sld [smem:[#allocation3 + %s27]]
    %s140 = ssub.s32 %s138, %s139
    %p141 = scmp.eq.s32.totalorder %s140, 0
    %s143 = sadd.s32 %s142, 1
    %s144 = scalar_select %p141, %s142, %s143
    %p147 = pneg %p141
    %p148 = scmp.eq.s32.totalorder %s20, 1
    %p149 = por %p147, %p148
    %p150 = scmp.ne.s32.totalorder %s142, %s145
    %p151 = scmp.eq.s32.totalorder %s20, 0
    %p152 = por %p150, %p151
    %p153 = scmp.ne.s32.totalorder %s142, %s145
    %p154 = scmp.eq.s32.totalorder %s25, 1
    %p155 = por %p153, %p154
    %p156 = scmp.ne.s32.totalorder %s145, %s146
    %p157 = scmp.eq.s32.totalorder %s25, 0
    %p158 = por %p156, %p157
    %p159 = scmp.ne.s32.totalorder %s145, %s146
    %p160 = scmp.eq.s32.totalorder %s26, 1
    %p161 = por %p159, %p160
    %p163 = scmp.ne.s32.totalorder %s146, %s162
    %p164 = scmp.eq.s32.totalorder %s26, 0
    %p165 = por %p163, %p164
    %s166 = ssub.s32 %s20, %s27
    %p167 = scmp.eq.s32.totalorder %s166, 0
    %s169 = sadd.s32 %s168, 1
    %s170 = scalar_select %p167, %s168, %s169
    %p173 = pneg %p167
    %p174 = scmp.eq.s32.totalorder %s20, 1
    %p175 = por %p173, %p174
    %p176 = scmp.ne.s32.totalorder %s168, %s171
    %p177 = scmp.eq.s32.totalorder %s20, 0
    %p178 = por %p176, %p177
    %p179 = scmp.ne.s32.totalorder %s168, %s171
    %p180 = scmp.eq.s32.totalorder %s25, 1
    %p181 = por %p179, %p180
    %p182 = scmp.ne.s32.totalorder %s171, %s172
    %p183 = scmp.eq.s32.totalorder %s25, 0
    %p184 = por %p182, %p183
    %p185 = scmp.ne.s32.totalorder %s171, %s172
    %p186 = scmp.eq.s32.totalorder %s26, 1
    %p187 = por %p185, %p186
    %p189 = scmp.ne.s32.totalorder %s172, %s188
    %p190 = scmp.eq.s32.totalorder %s26, 0
    %p191 = por %p189, %p190
    %p192 = scmp.le.s32.totalorder 1, %s20
    %p193 = scmp.lt.s32.totalorder %s20, 3
    %p194 = pnand %p192, %p193
    %p195 = pneg %p194
    // Predicated region
    $region9: #{representation_network_pallas.2} parent=5 // pred_check
      _
    $region10: #{representation_network_pallas.2} parent=5 // pred_check_branch
      %197 = sbr.rel (%p194) target = $region12
    $region11: #{representation_network_pallas.2} parent=5 // pred_region
      %s198 = ssub.s32 %s20, 1
    $region12: #{representation_network_pallas.2} parent=5 // pred_fallthru
      _
    %p199 = scmp.lt.s32.totalorder %s20, 2
    // Predicated region
    $region13: #{representation_network_pallas.2} parent=5 // pred_check
      %p200 = pneg %p199
    $region14: #{representation_network_pallas.2} parent=5 // pred_check_branch
      %202 = sbr.rel (%p200) target = $region16
    $region15: #{representation_network_pallas.2} parent=5 // pred_region
      // Predicated region
      $region17: #{representation_network_pallas.2} parent=15 // pred_check
        %p203 = pneg %p40
      $region18: #{representation_network_pallas.2} parent=15 // pred_check_branch
        %205 = sbr.rel (%p203) target = $region20
      $region19: #{representation_network_pallas.2} parent=15 // pred_region
        %p206 = scmp.lt.s32.totalorder %s20, 1
        %s207 = scalar_select %p206, %s20, 1
        %s208 = smul.addr %s207, 5
        %s209 = smul.addr %s208, 8
        %s210 = scalar_lea.vmem %s1, %s209
      $region20: #{representation_network_pallas.2} parent=15 // pred_fallthru
        _
      // Predicated region
      $region21: #{representation_network_pallas.2} parent=15 // pred_check
        %p211 = pneg %p68
      $region22: #{representation_network_pallas.2} parent=15 // pred_check_branch
        %213 = sbr.rel (%p211) target = $region24
      $region23: #{representation_network_pallas.2} parent=15 // pred_region
        %s214 = sld [smem:[#allocation3 + %s20]]
        %p215 = scmp.lt.s32.totalorder %s214, 1
        %s216 = scalar_select %p215, %s214, 1
        %s217 = smul.addr %s216, 360
        %s218 = smul.addr %s217, 8
        %s219 = scalar_lea.vmem %s2, %s218
        %s220 = sld [smem:[#allocation3 + %s20]]
      $region24: #{representation_network_pallas.2} parent=15 // pred_fallthru
        _
      // Predicated region
      $region25: #{representation_network_pallas.2} parent=15 // pred_check
        %p221 = pneg %p96
      $region26: #{representation_network_pallas.2} parent=15 // pred_check_branch
        %223 = sbr.rel (%p221) target = $region28
      $region27: #{representation_network_pallas.2} parent=15 // pred_region
        %s224 = sld [smem:[#allocation3 + %s20]]
        %p225 = scmp.lt.s32.totalorder %s224, 1
        %s226 = scalar_select %p225, %s224, 1
        %s227 = smul.addr %s226, 2
        %s228 = scalar_lea.vmem %s3, %s227
        %s229 = sld [smem:[#allocation3 + %s20]]
      $region28: #{representation_network_pallas.2} parent=15 // pred_fallthru
        _
      // Predicated region
      $region29: #{representation_network_pallas.2} parent=15 // pred_check
        %p230 = pneg %p124
      $region30: #{representation_network_pallas.2} parent=15 // pred_check_branch
        %232 = sbr.rel (%p230) target = $region32
      $region31: #{representation_network_pallas.2} parent=15 // pred_region
        %s233 = sld [smem:[#allocation3 + %s20]]
        %p234 = scmp.lt.s32.totalorder %s233, 1
        %s235 = scalar_select %p234, %s233, 1
        %s236 = smul.addr %s235, 20
        %s237 = smul.addr %s236, 8
        %s238 = scalar_lea.vmem %s4, %s237
        %s239 = sld [smem:[#allocation3 + %s20]]
      $region32: #{representation_network_pallas.2} parent=15 // pred_fallthru
        _
      // Predicated region
      $region33: #{representation_network_pallas.2} parent=15 // pred_check
        %p240 = pneg %p152
      $region34: #{representation_network_pallas.2} parent=15 // pred_check_branch
        %242 = sbr.rel (%p240) target = $region36
      $region35: #{representation_network_pallas.2} parent=15 // pred_region
        %s243 = sld [smem:[#allocation3 + %s20]]
        %p244 = scmp.lt.s32.totalorder %s243, 1
        %s245 = scalar_select %p244, %s243, 1
        %s246 = scalar_lea.vmem %s5, %s245
        %s247 = sld [smem:[#allocation3 + %s20]]
      $region36: #{representation_network_pallas.2} parent=15 // pred_fallthru
        _
    $region16: #{representation_network_pallas.2} parent=5 // pred_fallthru
      _
    %p248 = scmp.le.s32.totalorder 1, %s20
    %p249 = scmp.lt.s32.totalorder %s20, 3
    %p250 = pnand %p248, %p249
    %p251 = pneg %p250
    // Predicated region
    $region37: #{representation_network_pallas.2} parent=5 // pred_check
      _
    $region38: #{representation_network_pallas.2} parent=5 // pred_check_branch
      %253 = sbr.rel (%p250) target = $region40
    $region39: #{representation_network_pallas.2} parent=5 // pred_region
      %s254 = ssub.s32 %s20, 1
      %p255 = scmp.lt.s32.totalorder %s25, 1
      %s256 = scalar_select %p255, %s25, 1
      %s257 = smul.addr %s256, 5
      %s258 = smul.addr %s257, 8
      %s259 = scalar_lea.vmem %s1, %s258
      %p260 = pneg %p46
      %p261 = pneg %p43
      %s262 = sld [smem:[#allocation3 + %s25]]
      %p263 = scmp.lt.s32.totalorder %s262, 1
      %s264 = scalar_select %p263, %s262, 1
      %s265 = smul.addr %s264, 360
      %s266 = smul.addr %s265, 8
      %s267 = scalar_lea.vmem %s2, %s266
      %p268 = pneg %p74
      %p269 = pneg %p71
      %s270 = sld [smem:[#allocation3 + %s25]]
      %p271 = scmp.lt.s32.totalorder %s270, 1
      %s272 = scalar_select %p271, %s270, 1
      %s273 = smul.addr %s272, 2
      %s274 = scalar_lea.vmem %s3, %s273
      %p275 = pneg %p102
      %p276 = pneg %p99
      %s277 = sld [smem:[#allocation3 + %s25]]
      %p278 = scmp.lt.s32.totalorder %s277, 1
      %s279 = scalar_select %p278, %s277, 1
      %s280 = smul.addr %s279, 20
      %s281 = smul.addr %s280, 8
      %s282 = scalar_lea.vmem %s4, %s281
      %p283 = pneg %p130
      %p284 = pneg %p127
      %s285 = sld [smem:[#allocation3 + %s25]]
      %p286 = scmp.lt.s32.totalorder %s285, 1
      %s287 = scalar_select %p286, %s285, 1
      %s288 = scalar_lea.vmem %s5, %s287
      %p289 = pneg %p158
      %p290 = pneg %p155
      %p291 = pneg %p184
      %p292 = pneg %p181
      %p293 = scmp.lt.s32.totalorder %s25, 1
      %s294 = scalar_select %p293, %s25, 1
      %s295 = smul.addr %s294, 8
      %s296 = scalar_lea.vmem %s6, %s295
      %p297 = scmp.lt.s32.totalorder %s25, 1
      %s298 = scalar_select %p297, %s25, 1
      %s299 = smul.addr %s298, 5
      %s300 = smul.addr %s299, 8
      %s301 = scalar_lea.vmem %s1, %s300
      %s302 = sld [smem:[#allocation3 + %s25]]
      %p303 = scmp.lt.s32.totalorder %s302, 1
      %s304 = scalar_select %p303, %s302, 1
      %s305 = smul.addr %s304, 360
      %s306 = smul.addr %s305, 8
      %s307 = scalar_lea.vmem %s2, %s306
      %s308 = sld [smem:[#allocation3 + %s25]]
      %s309 = sld [smem:[#allocation3 + %s25]]
      %p310 = scmp.lt.s32.totalorder %s309, 1
      %s311 = scalar_select %p310, %s309, 1
      %s312 = smul.addr %s311, 2
      %s313 = scalar_lea.vmem %s3, %s312
      %s314 = sld [smem:[#allocation3 + %s25]]
      %s315 = sld [smem:[#allocation3 + %s25]]
      %p316 = scmp.lt.s32.totalorder %s315, 1
      %s317 = scalar_select %p316, %s315, 1
      %s318 = smul.addr %s317, 20
      %s319 = smul.addr %s318, 8
      %s320 = scalar_lea.vmem %s4, %s319
      %s321 = sld [smem:[#allocation3 + %s25]]
      %s322 = sld [smem:[#allocation3 + %s25]]
      %p323 = scmp.lt.s32.totalorder %s322, 1
      %s324 = scalar_select %p323, %s322, 1
      %s325 = scalar_lea.vmem %s5, %s324
      %s326 = sld [smem:[#allocation3 + %s25]]
      %p327 = scmp.lt.s32.totalorder %s25, 1
      %s328 = scalar_select %p327, %s25, 1
      %s329 = smul.addr %s328, 8
      %s330 = scalar_lea.vmem %s6, %s329
      %v331 = vld [vmem:[%s301] sm:$0xff]
      %v332 = vld [vmem:[%s301 + $0x8] sm:$0xff]
      %v333 = vld [vmem:[%s301 + $0x10] sm:$0xff]
      %v334 = vld [vmem:[%s301 + $0x18] sm:$0xff]
      %v335 = vld [vmem:[%s301 + $0x20] sm:$0xff]
      %v336 = vld [vmem:[%s307] sm:$0xff]
      %v337 = vld [vmem:[%s307 + $0x8] sm:$0xff]
      %v338 = vld [vmem:[%s307 + $0x10] sm:$0xff]
      %v339 = vld [vmem:[%s307 + $0x18] sm:$0xff]
      %v340 = vld [vmem:[%s307 + $0x20] sm:$0xff]
      %v341 = vld [vmem:[%s307 + $0x28] sm:$0xff]
      %v342 = vld [vmem:[%s307 + $0x30] sm:$0xff]
      %v343 = vld [vmem:[%s307 + $0x38] sm:$0xff]
      %v344 = vld [vmem:[%s307 + $0x40] sm:$0xff]
      %v345 = vld [vmem:[%s307 + $0x48] sm:$0xff]
      %v346 = vld [vmem:[%s307 + $0x50] sm:$0xff]
      %v347 = vld [vmem:[%s307 + $0x58] sm:$0xff]
      %v348 = vld [vmem:[%s307 + $0x60] sm:$0xff]
      %v349 = vld [vmem:[%s307 + $0x68] sm:$0xff]
      %v350 = vld [vmem:[%s307 + $0x70] sm:$0xff]
      %v351 = vld [vmem:[%s307 + $0x78] sm:$0xff]
      %v352 = vld [vmem:[%s307 + $0x80] sm:$0xff]
      %v353 = vld [vmem:[%s307 + $0x88] sm:$0xff]
      %v354 = vld [vmem:[%s307 + $0x90] sm:$0xff]
      %v355 = vld [vmem:[%s307 + $0x98] sm:$0xff]
      %v356 = vld [vmem:[%s307 + $0xa0] sm:$0xff]
      %v357 = vld [vmem:[%s307 + $0xa8] sm:$0xff]
      %v358 = vld [vmem:[%s307 + $0xb0] sm:$0xff]
      %v359 = vld [vmem:[%s307 + $0xb8] sm:$0xff]
      %v360 = vld [vmem:[%s307 + $0xc0] sm:$0xff]
      %v361 = vld [vmem:[%s307 + $0xc8] sm:$0xff]
      %v362 = vld [vmem:[%s307 + $0xd0] sm:$0xff]
      %v363 = vld [vmem:[%s307 + $0xd8] sm:$0xff]
      %v364 = vld [vmem:[%s307 + $0xe0] sm:$0xff]
      %v365 = vld [vmem:[%s307 + $0xe8] sm:$0xff]
      %v366 = vld [vmem:[%s307 + $0xf0] sm:$0xff]
      %v367 = vld [vmem:[%s307 + $0xf8] sm:$0xff]
      %v368 = vld [vmem:[%s307 + $0x100] sm:$0xff]
      %v369 = vld [vmem:[%s307 + $0x108] sm:$0xff]
      %v370 = vld [vmem:[%s307 + $0x110] sm:$0xff]
      %v371 = vld [vmem:[%s307 + $0x118] sm:$0xff]
      %v372 = vld [vmem:[%s307 + $0x120] sm:$0xff]
      %v373 = vld [vmem:[%s307 + $0x128] sm:$0xff]
      %v374 = vld [vmem:[%s307 + $0x130] sm:$0xff]
      %v375 = vld [vmem:[%s307 + $0x138] sm:$0xff]
      %v376 = vld [vmem:[%s307 + $0x140] sm:$0xff]
      %v377 = vld [vmem:[%s307 + $0x148] sm:$0xff]
      %v378 = vld [vmem:[%s307 + $0x150] sm:$0xff]
      %v379 = vld [vmem:[%s307 + $0x158] sm:$0xff]
      %v380 = vld [vmem:[%s307 + $0x160] sm:$0xff]
      %v381 = vld [vmem:[%s307 + $0x168] sm:$0xff]
      %v382 = vld [vmem:[%s307 + $0x170] sm:$0xff]
      %v383 = vld [vmem:[%s307 + $0x178] sm:$0xff]
      %v384 = vld [vmem:[%s307 + $0x180] sm:$0xff]
      %v385 = vld [vmem:[%s307 + $0x188] sm:$0xff]
      %v386 = vld [vmem:[%s307 + $0x190] sm:$0xff]
      %v387 = vld [vmem:[%s307 + $0x198] sm:$0xff]
      %v388 = vld [vmem:[%s307 + $0x1a0] sm:$0xff]
      %v389 = vld [vmem:[%s307 + $0x1a8] sm:$0xff]
      %v390 = vld [vmem:[%s307 + $0x1b0] sm:$0xff]
      %v391 = vld [vmem:[%s307 + $0x1b8] sm:$0xff]
      %v392 = vld [vmem:[%s307 + $0x1c0] sm:$0xff]
      %v393 = vld [vmem:[%s307 + $0x1c8] sm:$0xff]
      %v394 = vld [vmem:[%s307 + $0x1d0] sm:$0xff]
      %v395 = vld [vmem:[%s307 + $0x1d8] sm:$0xff]
      %v396 = vld [vmem:[%s307 + $0x1e0] sm:$0xff]
      %v397 = vld [vmem:[%s307 + $0x1e8] sm:$0xff]
      %v398 = vld [vmem:[%s307 + $0x1f0] sm:$0xff]
      %v399 = vld [vmem:[%s307 + $0x1f8] sm:$0xff]
      %v400 = vld [vmem:[%s307 + $0x200] sm:$0xff]
      %v401 = vld [vmem:[%s307 + $0x208] sm:$0xff]
      %v402 = vld [vmem:[%s307 + $0x210] sm:$0xff]
      %v403 = vld [vmem:[%s307 + $0x218] sm:$0xff]
      %v404 = vld [vmem:[%s307 + $0x220] sm:$0xff]
      %v405 = vld [vmem:[%s307 + $0x228] sm:$0xff]
      %v406 = vld [vmem:[%s307 + $0x230] sm:$0xff]
      %v407 = vld [vmem:[%s307 + $0x238] sm:$0xff]
      %v408 = vld [vmem:[%s307 + $0x240] sm:$0xff]
      %v409 = vld [vmem:[%s307 + $0x248] sm:$0xff]
      %v410 = vld [vmem:[%s307 + $0x250] sm:$0xff]
      %v411 = vld [vmem:[%s307 + $0x258] sm:$0xff]
      %v412 = vld [vmem:[%s307 + $0x260] sm:$0xff]
      %v413 = vld [vmem:[%s307 + $0x268] sm:$0xff]
      %v414 = vld [vmem:[%s307 + $0x270] sm:$0xff]
      %v415 = vld [vmem:[%s307 + $0x278] sm:$0xff]
      %v416 = vld [vmem:[%s307 + $0x280] sm:$0xff]
      %v417 = vld [vmem:[%s307 + $0x288] sm:$0xff]
      %v418 = vld [vmem:[%s307 + $0x290] sm:$0xff]
      %v419 = vld [vmem:[%s307 + $0x298] sm:$0xff]
      %v420 = vld [vmem:[%s307 + $0x2a0] sm:$0xff]
      %v421 = vld [vmem:[%s307 + $0x2a8] sm:$0xff]
      %v422 = vld [vmem:[%s307 + $0x2b0] sm:$0xff]
      %v423 = vld [vmem:[%s307 + $0x2b8] sm:$0xff]
      %v424 = vld [vmem:[%s307 + $0x2c0] sm:$0xff]
      %v425 = vld [vmem:[%s307 + $0x2c8] sm:$0xff]
      %v426 = vld [vmem:[%s307 + $0x2d0] sm:$0xff]
      %v427 = vld [vmem:[%s307 + $0x2d8] sm:$0xff]
      %v428 = vld [vmem:[%s307 + $0x2e0] sm:$0xff]
      %v429 = vld [vmem:[%s307 + $0x2e8] sm:$0xff]
      %v430 = vld [vmem:[%s307 + $0x2f0] sm:$0xff]
      %v431 = vld [vmem:[%s307 + $0x2f8] sm:$0xff]
      %v432 = vld [vmem:[%s307 + $0x300] sm:$0xff]
      %v433 = vld [vmem:[%s307 + $0x308] sm:$0xff]
      %v434 = vld [vmem:[%s307 + $0x310] sm:$0xff]
      %v435 = vld [vmem:[%s307 + $0x318] sm:$0xff]
      %v436 = vld [vmem:[%s307 + $0x320] sm:$0xff]
      %v437 = vld [vmem:[%s307 + $0x328] sm:$0xff]
      %v438 = vld [vmem:[%s307 + $0x330] sm:$0xff]
      %v439 = vld [vmem:[%s307 + $0x338] sm:$0xff]
      %v440 = vld [vmem:[%s307 + $0x340] sm:$0xff]
      %v441 = vld [vmem:[%s307 + $0x348] sm:$0xff]
      %v442 = vld [vmem:[%s307 + $0x350] sm:$0xff]
      %v443 = vld [vmem:[%s307 + $0x358] sm:$0xff]
      %v444 = vld [vmem:[%s307 + $0x360] sm:$0xff]
      %v445 = vld [vmem:[%s307 + $0x368] sm:$0xff]
      %v446 = vld [vmem:[%s307 + $0x370] sm:$0xff]
      %v447 = vld [vmem:[%s307 + $0x378] sm:$0xff]
      %v448 = vld [vmem:[%s307 + $0x380] sm:$0xff]
      %v449 = vld [vmem:[%s307 + $0x388] sm:$0xff]
      %v450 = vld [vmem:[%s307 + $0x390] sm:$0xff]
      %v451 = vld [vmem:[%s307 + $0x398] sm:$0xff]
      %v452 = vld [vmem:[%s307 + $0x3a0] sm:$0xff]
      %v453 = vld [vmem:[%s307 + $0x3a8] sm:$0xff]
      %v454 = vld [vmem:[%s307 + $0x3b0] sm:$0xff]
      %v455 = vld [vmem:[%s307 + $0x3b8] sm:$0xff]
      %v456 = vld [vmem:[%s307 + $0x3c0] sm:$0xff]
      %v457 = vld [vmem:[%s307 + $0x3c8] sm:$0xff]
      %v458 = vld [vmem:[%s307 + $0x3d0] sm:$0xff]
      %v459 = vld [vmem:[%s307 + $0x3d8] sm:$0xff]
      %v460 = vld [vmem:[%s307 + $0x3e0] sm:$0xff]
      %v461 = vld [vmem:[%s307 + $0x3e8] sm:$0xff]
      %v462 = vld [vmem:[%s307 + $0x3f0] sm:$0xff]
      %v463 = vld [vmem:[%s307 + $0x3f8] sm:$0xff]
      %v464 = vld [vmem:[%s307 + $0x400] sm:$0xff]
      %v465 = vld [vmem:[%s307 + $0x408] sm:$0xff]
      %v466 = vld [vmem:[%s307 + $0x410] sm:$0xff]
      %v467 = vld [vmem:[%s307 + $0x418] sm:$0xff]
      %v468 = vld [vmem:[%s307 + $0x420] sm:$0xff]
      %v469 = vld [vmem:[%s307 + $0x428] sm:$0xff]
      %v470 = vld [vmem:[%s307 + $0x430] sm:$0xff]
      %v471 = vld [vmem:[%s307 + $0x438] sm:$0xff]
      %v472 = vld [vmem:[%s307 + $0x440] sm:$0xff]
      %v473 = vld [vmem:[%s307 + $0x448] sm:$0xff]
      %v474 = vld [vmem:[%s307 + $0x450] sm:$0xff]
      %v475 = vld [vmem:[%s307 + $0x458] sm:$0xff]
      %v476 = vld [vmem:[%s307 + $0x460] sm:$0xff]
      %v477 = vld [vmem:[%s307 + $0x468] sm:$0xff]
      %v478 = vld [vmem:[%s307 + $0x470] sm:$0xff]
      %v479 = vld [vmem:[%s307 + $0x478] sm:$0xff]
      %v480 = vld [vmem:[%s307 + $0x480] sm:$0xff]
      %v481 = vld [vmem:[%s307 + $0x488] sm:$0xff]
      %v482 = vld [vmem:[%s307 + $0x490] sm:$0xff]
      %v483 = vld [vmem:[%s307 + $0x498] sm:$0xff]
      %v484 = vld [vmem:[%s307 + $0x4a0] sm:$0xff]
      %v485 = vld [vmem:[%s307 + $0x4a8] sm:$0xff]
      %v486 = vld [vmem:[%s307 + $0x4b0] sm:$0xff]
      %v487 = vld [vmem:[%s307 + $0x4b8] sm:$0xff]
      %v488 = vld [vmem:[%s307 + $0x4c0] sm:$0xff]
      %v489 = vld [vmem:[%s307 + $0x4c8] sm:$0xff]
      %v490 = vld [vmem:[%s307 + $0x4d0] sm:$0xff]
      %v491 = vld [vmem:[%s307 + $0x4d8] sm:$0xff]
      %v492 = vld [vmem:[%s307 + $0x4e0] sm:$0xff]
      %v493 = vld [vmem:[%s307 + $0x4e8] sm:$0xff]
      %v494 = vld [vmem:[%s307 + $0x4f0] sm:$0xff]
      %v495 = vld [vmem:[%s307 + $0x4f8] sm:$0xff]
      %v496 = vld [vmem:[%s307 + $0x500] sm:$0xff]
      %v497 = vld [vmem:[%s307 + $0x508] sm:$0xff]
      %v498 = vld [vmem:[%s307 + $0x510] sm:$0xff]
      %v499 = vld [vmem:[%s307 + $0x518] sm:$0xff]
      %v500 = vld [vmem:[%s307 + $0x520] sm:$0xff]
      %v501 = vld [vmem:[%s307 + $0x528] sm:$0xff]
      %v502 = vld [vmem:[%s307 + $0x530] sm:$0xff]
      %v503 = vld [vmem:[%s307 + $0x538] sm:$0xff]
      %v504 = vld [vmem:[%s307 + $0x540] sm:$0xff]
      %v505 = vld [vmem:[%s307 + $0x548] sm:$0xff]
      %v506 = vld [vmem:[%s307 + $0x550] sm:$0xff]
      %v507 = vld [vmem:[%s307 + $0x558] sm:$0xff]
      %v508 = vld [vmem:[%s307 + $0x560] sm:$0xff]
      %v509 = vld [vmem:[%s307 + $0x568] sm:$0xff]
      %v510 = vld [vmem:[%s307 + $0x570] sm:$0xff]
      %v511 = vld [vmem:[%s307 + $0x578] sm:$0xff]
      %v512 = vld [vmem:[%s307 + $0x580] sm:$0xff]
      %v513 = vld [vmem:[%s307 + $0x588] sm:$0xff]
      %v514 = vld [vmem:[%s307 + $0x590] sm:$0xff]
      %v515 = vld [vmem:[%s307 + $0x598] sm:$0xff]
      %v516 = vld [vmem:[%s307 + $0x5a0] sm:$0xff]
      %v517 = vld [vmem:[%s307 + $0x5a8] sm:$0xff]
      %v518 = vld [vmem:[%s307 + $0x5b0] sm:$0xff]
      %v519 = vld [vmem:[%s307 + $0x5b8] sm:$0xff]
      %v520 = vld [vmem:[%s307 + $0x5c0] sm:$0xff]
      %v521 = vld [vmem:[%s307 + $0x5c8] sm:$0xff]
      %v522 = vld [vmem:[%s307 + $0x5d0] sm:$0xff]
      %v523 = vld [vmem:[%s307 + $0x5d8] sm:$0xff]
      %v524 = vld [vmem:[%s307 + $0x5e0] sm:$0xff]
      %v525 = vld [vmem:[%s307 + $0x5e8] sm:$0xff]
      %v526 = vld [vmem:[%s307 + $0x5f0] sm:$0xff]
      %v527 = vld [vmem:[%s307 + $0x5f8] sm:$0xff]
      %v528 = vld [vmem:[%s307 + $0x600] sm:$0xff]
      %v529 = vld [vmem:[%s307 + $0x608] sm:$0xff]
      %v530 = vld [vmem:[%s307 + $0x610] sm:$0xff]
      %v531 = vld [vmem:[%s307 + $0x618] sm:$0xff]
      %v532 = vld [vmem:[%s307 + $0x620] sm:$0xff]
      %v533 = vld [vmem:[%s307 + $0x628] sm:$0xff]
      %v534 = vld [vmem:[%s307 + $0x630] sm:$0xff]
      %v535 = vld [vmem:[%s307 + $0x638] sm:$0xff]
      %v536 = vld [vmem:[%s307 + $0x640] sm:$0xff]
      %v537 = vld [vmem:[%s307 + $0x648] sm:$0xff]
      %v538 = vld [vmem:[%s307 + $0x650] sm:$0xff]
      %v539 = vld [vmem:[%s307 + $0x658] sm:$0xff]
      %v540 = vld [vmem:[%s307 + $0x660] sm:$0xff]
      %v541 = vld [vmem:[%s307 + $0x668] sm:$0xff]
      %v542 = vld [vmem:[%s307 + $0x670] sm:$0xff]
      %v543 = vld [vmem:[%s307 + $0x678] sm:$0xff]
      %v544 = vld [vmem:[%s307 + $0x680] sm:$0xff]
      %v545 = vld [vmem:[%s307 + $0x688] sm:$0xff]
      %v546 = vld [vmem:[%s307 + $0x690] sm:$0xff]
      %v547 = vld [vmem:[%s307 + $0x698] sm:$0xff]
      %v548 = vld [vmem:[%s307 + $0x6a0] sm:$0xff]
      %v549 = vld [vmem:[%s307 + $0x6a8] sm:$0xff]
      %v550 = vld [vmem:[%s307 + $0x6b0] sm:$0xff]
      %v551 = vld [vmem:[%s307 + $0x6b8] sm:$0xff]
      %v552 = vld [vmem:[%s307 + $0x6c0] sm:$0xff]
      %v553 = vld [vmem:[%s307 + $0x6c8] sm:$0xff]
      %v554 = vld [vmem:[%s307 + $0x6d0] sm:$0xff]
      %v555 = vld [vmem:[%s307 + $0x6d8] sm:$0xff]
      %v556 = vld [vmem:[%s307 + $0x6e0] sm:$0xff]
      %v557 = vld [vmem:[%s307 + $0x6e8] sm:$0xff]
      %v558 = vld [vmem:[%s307 + $0x6f0] sm:$0xff]
      %v559 = vld [vmem:[%s307 + $0x6f8] sm:$0xff]
      %v560 = vld [vmem:[%s307 + $0x700] sm:$0xff]
      %v561 = vld [vmem:[%s307 + $0x708] sm:$0xff]
      %v562 = vld [vmem:[%s307 + $0x710] sm:$0xff]
      %v563 = vld [vmem:[%s307 + $0x718] sm:$0xff]
      %v564 = vld [vmem:[%s307 + $0x720] sm:$0xff]
      %v565 = vld [vmem:[%s307 + $0x728] sm:$0xff]
      %v566 = vld [vmem:[%s307 + $0x730] sm:$0xff]
      %v567 = vld [vmem:[%s307 + $0x738] sm:$0xff]
      %v568 = vld [vmem:[%s307 + $0x740] sm:$0xff]
      %v569 = vld [vmem:[%s307 + $0x748] sm:$0xff]
      %v570 = vld [vmem:[%s307 + $0x750] sm:$0xff]
      %v571 = vld [vmem:[%s307 + $0x758] sm:$0xff]
      %v572 = vld [vmem:[%s307 + $0x760] sm:$0xff]
      %v573 = vld [vmem:[%s307 + $0x768] sm:$0xff]
      %v574 = vld [vmem:[%s307 + $0x770] sm:$0xff]
      %v575 = vld [vmem:[%s307 + $0x778] sm:$0xff]
      %v576 = vld [vmem:[%s307 + $0x780] sm:$0xff]
      %v577 = vld [vmem:[%s307 + $0x788] sm:$0xff]
      %v578 = vld [vmem:[%s307 + $0x790] sm:$0xff]
      %v579 = vld [vmem:[%s307 + $0x798] sm:$0xff]
      %v580 = vld [vmem:[%s307 + $0x7a0] sm:$0xff]
      %v581 = vld [vmem:[%s307 + $0x7a8] sm:$0xff]
      %v582 = vld [vmem:[%s307 + $0x7b0] sm:$0xff]
      %v583 = vld [vmem:[%s307 + $0x7b8] sm:$0xff]
      %v584 = vld [vmem:[%s307 + $0x7c0] sm:$0xff]
      %v585 = vld [vmem:[%s307 + $0x7c8] sm:$0xff]
      %v586 = vld [vmem:[%s307 + $0x7d0] sm:$0xff]
      %v587 = vld [vmem:[%s307 + $0x7d8] sm:$0xff]
      %v588 = vld [vmem:[%s307 + $0x7e0] sm:$0xff]
      %v589 = vld [vmem:[%s307 + $0x7e8] sm:$0xff]
      %v590 = vld [vmem:[%s307 + $0x7f0] sm:$0xff]
      %v591 = vld [vmem:[%s307 + $0x7f8] sm:$0xff]
      %v592 = vld [vmem:[%s307 + $0x800] sm:$0xff]
      %v593 = vld [vmem:[%s307 + $0x808] sm:$0xff]
      %v594 = vld [vmem:[%s307 + $0x810] sm:$0xff]
      %v595 = vld [vmem:[%s307 + $0x818] sm:$0xff]
      %v596 = vld [vmem:[%s307 + $0x820] sm:$0xff]
      %v597 = vld [vmem:[%s307 + $0x828] sm:$0xff]
      %v598 = vld [vmem:[%s307 + $0x830] sm:$0xff]
      %v599 = vld [vmem:[%s307 + $0x838] sm:$0xff]
      %v600 = vld [vmem:[%s307 + $0x840] sm:$0xff]
      %v601 = vld [vmem:[%s307 + $0x848] sm:$0xff]
      %v602 = vld [vmem:[%s307 + $0x850] sm:$0xff]
      %v603 = vld [vmem:[%s307 + $0x858] sm:$0xff]
      %v604 = vld [vmem:[%s307 + $0x860] sm:$0xff]
      %v605 = vld [vmem:[%s307 + $0x868] sm:$0xff]
      %v606 = vld [vmem:[%s307 + $0x870] sm:$0xff]
      %v607 = vld [vmem:[%s307 + $0x878] sm:$0xff]
      %v608 = vld [vmem:[%s307 + $0x880] sm:$0xff]
      %v609 = vld [vmem:[%s307 + $0x888] sm:$0xff]
      %v610 = vld [vmem:[%s307 + $0x890] sm:$0xff]
      %v611 = vld [vmem:[%s307 + $0x898] sm:$0xff]
      %v612 = vld [vmem:[%s307 + $0x8a0] sm:$0xff]
      %v613 = vld [vmem:[%s307 + $0x8a8] sm:$0xff]
      %v614 = vld [vmem:[%s307 + $0x8b0] sm:$0xff]
      %v615 = vld [vmem:[%s307 + $0x8b8] sm:$0xff]
      %v616 = vld [vmem:[%s307 + $0x8c0] sm:$0xff]
      %v617 = vld [vmem:[%s307 + $0x8c8] sm:$0xff]
      %v618 = vld [vmem:[%s307 + $0x8d0] sm:$0xff]
      %v619 = vld [vmem:[%s307 + $0x8d8] sm:$0xff]
      %v620 = vld [vmem:[%s307 + $0x8e0] sm:$0xff]
      %v621 = vld [vmem:[%s307 + $0x8e8] sm:$0xff]
      %v622 = vld [vmem:[%s307 + $0x8f0] sm:$0xff]
      %v623 = vld [vmem:[%s307 + $0x8f8] sm:$0xff]
      %v624 = vld [vmem:[%s307 + $0x900] sm:$0xff]
      %v625 = vld [vmem:[%s307 + $0x908] sm:$0xff]
      %v626 = vld [vmem:[%s307 + $0x910] sm:$0xff]
      %v627 = vld [vmem:[%s307 + $0x918] sm:$0xff]
      %v628 = vld [vmem:[%s307 + $0x920] sm:$0xff]
      %v629 = vld [vmem:[%s307 + $0x928] sm:$0xff]
      %v630 = vld [vmem:[%s307 + $0x930] sm:$0xff]
      %v631 = vld [vmem:[%s307 + $0x938] sm:$0xff]
      %v632 = vld [vmem:[%s307 + $0x940] sm:$0xff]
      %v633 = vld [vmem:[%s307 + $0x948] sm:$0xff]
      %v634 = vld [vmem:[%s307 + $0x950] sm:$0xff]
      %v635 = vld [vmem:[%s307 + $0x958] sm:$0xff]
      %v636 = vld [vmem:[%s307 + $0x960] sm:$0xff]
      %v637 = vld [vmem:[%s307 + $0x968] sm:$0xff]
      %v638 = vld [vmem:[%s307 + $0x970] sm:$0xff]
      %v639 = vld [vmem:[%s307 + $0x978] sm:$0xff]
      %v640 = vld [vmem:[%s307 + $0x980] sm:$0xff]
      %v641 = vld [vmem:[%s307 + $0x988] sm:$0xff]
      %v642 = vld [vmem:[%s307 + $0x990] sm:$0xff]
      %v643 = vld [vmem:[%s307 + $0x998] sm:$0xff]
      %v644 = vld [vmem:[%s307 + $0x9a0] sm:$0xff]
      %v645 = vld [vmem:[%s307 + $0x9a8] sm:$0xff]
      %v646 = vld [vmem:[%s307 + $0x9b0] sm:$0xff]
      %v647 = vld [vmem:[%s307 + $0x9b8] sm:$0xff]
      %v648 = vld [vmem:[%s307 + $0x9c0] sm:$0xff]
      %v649 = vld [vmem:[%s307 + $0x9c8] sm:$0xff]
      %v650 = vld [vmem:[%s307 + $0x9d0] sm:$0xff]
      %v651 = vld [vmem:[%s307 + $0x9d8] sm:$0xff]
      %v652 = vld [vmem:[%s307 + $0x9e0] sm:$0xff]
      %v653 = vld [vmem:[%s307 + $0x9e8] sm:$0xff]
      %v654 = vld [vmem:[%s307 + $0x9f0] sm:$0xff]
      %v655 = vld [vmem:[%s307 + $0x9f8] sm:$0xff]
      %v656 = vld [vmem:[%s307 + $0xa00] sm:$0xff]
      %v657 = vld [vmem:[%s307 + $0xa08] sm:$0xff]
      %v658 = vld [vmem:[%s307 + $0xa10] sm:$0xff]
      %v659 = vld [vmem:[%s307 + $0xa18] sm:$0xff]
      %v660 = vld [vmem:[%s307 + $0xa20] sm:$0xff]
      %v661 = vld [vmem:[%s307 + $0xa28] sm:$0xff]
      %v662 = vld [vmem:[%s307 + $0xa30] sm:$0xff]
      %v663 = vld [vmem:[%s307 + $0xa38] sm:$0xff]
      %v664 = vld [vmem:[%s307 + $0xa40] sm:$0xff]
      %v665 = vld [vmem:[%s307 + $0xa48] sm:$0xff]
      %v666 = vld [vmem:[%s307 + $0xa50] sm:$0xff]
      %v667 = vld [vmem:[%s307 + $0xa58] sm:$0xff]
      %v668 = vld [vmem:[%s307 + $0xa60] sm:$0xff]
      %v669 = vld [vmem:[%s307 + $0xa68] sm:$0xff]
      %v670 = vld [vmem:[%s307 + $0xa70] sm:$0xff]
      %v671 = vld [vmem:[%s307 + $0xa78] sm:$0xff]
      %v672 = vld [vmem:[%s307 + $0xa80] sm:$0xff]
      %v673 = vld [vmem:[%s307 + $0xa88] sm:$0xff]
      %v674 = vld [vmem:[%s307 + $0xa90] sm:$0xff]
      %v675 = vld [vmem:[%s307 + $0xa98] sm:$0xff]
      %v676 = vld [vmem:[%s307 + $0xaa0] sm:$0xff]
      %v677 = vld [vmem:[%s307 + $0xaa8] sm:$0xff]
      %v678 = vld [vmem:[%s307 + $0xab0] sm:$0xff]
      %v679 = vld [vmem:[%s307 + $0xab8] sm:$0xff]
      %v680 = vld [vmem:[%s307 + $0xac0] sm:$0xff]
      %v681 = vld [vmem:[%s307 + $0xac8] sm:$0xff]
      %v682 = vld [vmem:[%s307 + $0xad0] sm:$0xff]
      %v683 = vld [vmem:[%s307 + $0xad8] sm:$0xff]
      %v684 = vld [vmem:[%s307 + $0xae0] sm:$0xff]
      %v685 = vld [vmem:[%s307 + $0xae8] sm:$0xff]
      %v686 = vld [vmem:[%s307 + $0xaf0] sm:$0xff]
      %v687 = vld [vmem:[%s307 + $0xaf8] sm:$0xff]
      %v688 = vld [vmem:[%s307 + $0xb00] sm:$0xff]
      %v689 = vld [vmem:[%s307 + $0xb08] sm:$0xff]
      %v690 = vld [vmem:[%s307 + $0xb10] sm:$0xff]
      %v691 = vld [vmem:[%s307 + $0xb18] sm:$0xff]
      %v692 = vld [vmem:[%s307 + $0xb20] sm:$0xff]
      %v693 = vld [vmem:[%s307 + $0xb28] sm:$0xff]
      %v694 = vld [vmem:[%s307 + $0xb30] sm:$0xff]
      %v695 = vld [vmem:[%s307 + $0xb38] sm:$0xff]
      %vm696 = vcmask 523264
      %v698 = vsel %vm696, %v335, 0
      %700 = vmatpush.msra.mxu0 %v411
      %701 = vmatpush.msra.mxu0 %v406
      %702 = vmatpush.msra.mxu0 %v401
      %703 = vmatpush.msra.mxu0 %v396
      %704 = vmatpush.msra.mxu0 %v391
      %705 = vmatpush.msra.mxu0 %v386
      %706 = vmatpush.msra.mxu0 %v381
      %707 = vmatpush.msra.mxu0 %v376
      %708 = vmatpush.msra.mxu0 %v371
      %709 = vmatpush.msra.mxu0 %v366
      %710 = vmatpush.msra.mxu0 %v361
      %711 = vmatpush.msra.mxu0 %v356
      %712 = vmatpush.msra.mxu0 %v351
      %713 = vmatpush.msra.mxu0 %v346
      %714 = vmatpush.msra.mxu0 %v341
      %715 = vmatpush.msra.mxu0 %v336
      %716 = vmatmul.f32.gmra.mxu0 %v331
      %v717 = vpop.f32.mrf.mxu0
      %v718 = vadd.f32 0.0, %v717
      %719 = vdwg.mxu0
      %720 = vmatpush.msra.mxu0 %v491
      %721 = vmatpush.msra.mxu0 %v486
      %722 = vmatpush.msra.mxu0 %v481
      %723 = vmatpush.msra.mxu0 %v476
      %724 = vmatpush.msra.mxu0 %v471
      %725 = vmatpush.msra.mxu0 %v466
      %726 = vmatpush.msra.mxu0 %v461
      %727 = vmatpush.msra.mxu0 %v456
      %728 = vmatpush.msra.mxu0 %v451
      %729 = vmatpush.msra.mxu0 %v446
      %730 = vmatpush.msra.mxu0 %v441
      %731 = vmatpush.msra.mxu0 %v436
      %732 = vmatpush.msra.mxu0 %v431
      %733 = vmatpush.msra.mxu0 %v426
      %734 = vmatpush.msra.mxu0 %v421
      %735 = vmatpush.msra.mxu0 %v416
      %736 = vmatmul.f32.gmra.mxu0 %v332
      %v737 = vpop.f32.mrf.mxu0
      %v738 = vadd.f32 %v718, %v737
      %739 = vdwg.mxu0
      %740 = vmatpush.msra.mxu0 %v571
      %741 = vmatpush.msra.mxu0 %v566
      %742 = vmatpush.msra.mxu0 %v561
      %743 = vmatpush.msra.mxu0 %v556
      %744 = vmatpush.msra.mxu0 %v551
      %745 = vmatpush.msra.mxu0 %v546
      %746 = vmatpush.msra.mxu0 %v541
      %747 = vmatpush.msra.mxu0 %v536
      %748 = vmatpush.msra.mxu0 %v531
      %749 = vmatpush.msra.mxu0 %v526
      %750 = vmatpush.msra.mxu0 %v521
      %751 = vmatpush.msra.mxu0 %v516
      %752 = vmatpush.msra.mxu0 %v511
      %753 = vmatpush.msra.mxu0 %v506
      %754 = vmatpush.msra.mxu0 %v501
      %755 = vmatpush.msra.mxu0 %v496
      %756 = vmatmul.f32.gmra.mxu0 %v333
      %v757 = vpop.f32.mrf.mxu0
      %v758 = vadd.f32 %v738, %v757
      %759 = vdwg.mxu0
      %760 = vmatpush.msra.mxu0 %v651
      %761 = vmatpush.msra.mxu0 %v646
      %762 = vmatpush.msra.mxu0 %v641
      %763 = vmatpush.msra.mxu0 %v636
      %764 = vmatpush.msra.mxu0 %v631
      %765 = vmatpush.msra.mxu0 %v626
      %766 = vmatpush.msra.mxu0 %v621
      %767 = vmatpush.msra.mxu0 %v616
      %768 = vmatpush.msra.mxu0 %v611
      %769 = vmatpush.msra.mxu0 %v606
      %770 = vmatpush.msra.mxu0 %v601
      %771 = vmatpush.msra.mxu0 %v596
      %772 = vmatpush.msra.mxu0 %v591
      %773 = vmatpush.msra.mxu0 %v586
      %774 = vmatpush.msra.mxu0 %v581
      %775 = vmatpush.msra.mxu0 %v576
      %776 = vmatmul.f32.gmra.mxu0 %v334
      %v777 = vpop.f32.mrf.mxu0
      %v778 = vadd.f32 %v758, %v777
      %779 = vdwg.mxu0
      %780 = vmatpush.msra.mxu0 0.0
      %781 = vmatpush.msra.mxu0 0.0
      %782 = vmatpush.msra.mxu0 0.0
      %783 = vmatpush.msra.mxu0 0.0
      %784 = vmatpush.msra.mxu0 0.0
      %785 = vmatpush.msra.mxu0 0.0
      %786 = vmatpush.msra.mxu0 0.0
      %787 = vmatpush.msra.mxu0 0.0
      %788 = vmatpush.msra.mxu0 %v691
      %789 = vmatpush.msra.mxu0 %v686
      %790 = vmatpush.msra.mxu0 %v681
      %791 = vmatpush.msra.mxu0 %v676
      %792 = vmatpush.msra.mxu0 %v671
      %793 = vmatpush.msra.mxu0 %v666
      %794 = vmatpush.msra.mxu0 %v661
      %795 = vmatpush.msra.mxu0 %v656
      %796 = vmatmul.f32.gmra.mxu0 %v698
      %v797 = vpop.f32.mrf.mxu0
      %v798 = vadd.f32 %v778, %v797
      %799 = vdwg.mxu0
      %800 = vmatpush.msra.mxu0 %v412
      %801 = vmatpush.msra.mxu0 %v407
      %802 = vmatpush.msra.mxu0 %v402
      %803 = vmatpush.msra.mxu0 %v397
      %804 = vmatpush.msra.mxu0 %v392
      %805 = vmatpush.msra.mxu0 %v387
      %806 = vmatpush.msra.mxu0 %v382
      %807 = vmatpush.msra.mxu0 %v377
      %808 = vmatpush.msra.mxu0 %v372
      %809 = vmatpush.msra.mxu0 %v367
      %810 = vmatpush.msra.mxu0 %v362
      %811 = vmatpush.msra.mxu0 %v357
      %812 = vmatpush.msra.mxu0 %v352
      %813 = vmatpush.msra.mxu0 %v347
      %814 = vmatpush.msra.mxu0 %v342
      %815 = vmatpush.msra.mxu0 %v337
      %816 = vmatmul.f32.gmra.mxu0 %v331
      %v817 = vpop.f32.mrf.mxu0
      %v818 = vadd.f32 0.0, %v817
      %819 = vdwg.mxu0
      %820 = vmatpush.msra.mxu0 %v492
      %821 = vmatpush.msra.mxu0 %v487
      %822 = vmatpush.msra.mxu0 %v482
      %823 = vmatpush.msra.mxu0 %v477
      %824 = vmatpush.msra.mxu0 %v472
      %825 = vmatpush.msra.mxu0 %v467
      %826 = vmatpush.msra.mxu0 %v462
      %827 = vmatpush.msra.mxu0 %v457
      %828 = vmatpush.msra.mxu0 %v452
      %829 = vmatpush.msra.mxu0 %v447
      %830 = vmatpush.msra.mxu0 %v442
      %831 = vmatpush.msra.mxu0 %v437
      %832 = vmatpush.msra.mxu0 %v432
      %833 = vmatpush.msra.mxu0 %v427
      %834 = vmatpush.msra.mxu0 %v422
      %835 = vmatpush.msra.mxu0 %v417
      %836 = vmatmul.f32.gmra.mxu0 %v332
      %v837 = vpop.f32.mrf.mxu0
      %v838 = vadd.f32 %v818, %v837
      %839 = vdwg.mxu0
      %840 = vmatpush.msra.mxu0 %v572
      %841 = vmatpush.msra.mxu0 %v567
      %842 = vmatpush.msra.mxu0 %v562
      %843 = vmatpush.msra.mxu0 %v557
      %844 = vmatpush.msra.mxu0 %v552
      %845 = vmatpush.msra.mxu0 %v547
      %846 = vmatpush.msra.mxu0 %v542
      %847 = vmatpush.msra.mxu0 %v537
      %848 = vmatpush.msra.mxu0 %v532
      %849 = vmatpush.msra.mxu0 %v527
      %850 = vmatpush.msra.mxu0 %v522
      %851 = vmatpush.msra.mxu0 %v517
      %852 = vmatpush.msra.mxu0 %v512
      %853 = vmatpush.msra.mxu0 %v507
      %854 = vmatpush.msra.mxu0 %v502
      %855 = vmatpush.msra.mxu0 %v497
      %856 = vmatmul.f32.gmra.mxu0 %v333
      %v857 = vpop.f32.mrf.mxu0
      %v858 = vadd.f32 %v838, %v857
      %859 = vdwg.mxu0
      %860 = vmatpush.msra.mxu0 %v652
      %861 = vmatpush.msra.mxu0 %v647
      %862 = vmatpush.msra.mxu0 %v642
      %863 = vmatpush.msra.mxu0 %v637
      %864 = vmatpush.msra.mxu0 %v632
      %865 = vmatpush.msra.mxu0 %v627
      %866 = vmatpush.msra.mxu0 %v622
      %867 = vmatpush.msra.mxu0 %v617
      %868 = vmatpush.msra.mxu0 %v612
      %869 = vmatpush.msra.mxu0 %v607
      %870 = vmatpush.msra.mxu0 %v602
      %871 = vmatpush.msra.mxu0 %v597
      %872 = vmatpush.msra.mxu0 %v592
      %873 = vmatpush.msra.mxu0 %v587
      %874 = vmatpush.msra.mxu0 %v582
      %875 = vmatpush.msra.mxu0 %v577
      %876 = vmatmul.f32.gmra.mxu0 %v334
      %v877 = vpop.f32.mrf.mxu0
      %v878 = vadd.f32 %v858, %v877
      %879 = vdwg.mxu0
      %880 = vmatpush.msra.mxu0 0.0
      %881 = vmatpush.msra.mxu0 0.0
      %882 = vmatpush.msra.mxu0 0.0
      %883 = vmatpush.msra.mxu0 0.0
      %884 = vmatpush.msra.mxu0 0.0
      %885 = vmatpush.msra.mxu0 0.0
      %886 = vmatpush.msra.mxu0 0.0
      %887 = vmatpush.msra.mxu0 0.0
      %888 = vmatpush.msra.mxu0 %v692
      %889 = vmatpush.msra.mxu0 %v687
      %890 = vmatpush.msra.mxu0 %v682
      %891 = vmatpush.msra.mxu0 %v677
      %892 = vmatpush.msra.mxu0 %v672
      %893 = vmatpush.msra.mxu0 %v667
      %894 = vmatpush.msra.mxu0 %v662
      %895 = vmatpush.msra.mxu0 %v657
      %896 = vmatmul.f32.gmra.mxu0 %v698
      %v897 = vpop.f32.mrf.mxu0
      %v898 = vadd.f32 %v878, %v897
      %899 = vdwg.mxu0
      %900 = vmatpush.msra.mxu0 %v413
      %901 = vmatpush.msra.mxu0 %v408
      %902 = vmatpush.msra.mxu0 %v403
      %903 = vmatpush.msra.mxu0 %v398
      %904 = vmatpush.msra.mxu0 %v393
      %905 = vmatpush.msra.mxu0 %v388
      %906 = vmatpush.msra.mxu0 %v383
      %907 = vmatpush.msra.mxu0 %v378
      %908 = vmatpush.msra.mxu0 %v373
      %909 = vmatpush.msra.mxu0 %v368
      %910 = vmatpush.msra.mxu0 %v363
      %911 = vmatpush.msra.mxu0 %v358
      %912 = vmatpush.msra.mxu0 %v353
      %913 = vmatpush.msra.mxu0 %v348
      %914 = vmatpush.msra.mxu0 %v343
      %915 = vmatpush.msra.mxu0 %v338
      %916 = vmatmul.f32.gmra.mxu0 %v331
      %v917 = vpop.f32.mrf.mxu0
      %v918 = vadd.f32 0.0, %v917
      %919 = vdwg.mxu0
      %920 = vmatpush.msra.mxu0 %v493
      %921 = vmatpush.msra.mxu0 %v488
      %922 = vmatpush.msra.mxu0 %v483
      %923 = vmatpush.msra.mxu0 %v478
      %924 = vmatpush.msra.mxu0 %v473
      %925 = vmatpush.msra.mxu0 %v468
      %926 = vmatpush.msra.mxu0 %v463
      %927 = vmatpush.msra.mxu0 %v458
      %928 = vmatpush.msra.mxu0 %v453
      %929 = vmatpush.msra.mxu0 %v448
      %930 = vmatpush.msra.mxu0 %v443
      %931 = vmatpush.msra.mxu0 %v438
      %932 = vmatpush.msra.mxu0 %v433
      %933 = vmatpush.msra.mxu0 %v428
      %934 = vmatpush.msra.mxu0 %v423
      %935 = vmatpush.msra.mxu0 %v418
      %936 = vmatmul.f32.gmra.mxu0 %v332
      %v937 = vpop.f32.mrf.mxu0
      %v938 = vadd.f32 %v918, %v937
      %939 = vdwg.mxu0
      %940 = vmatpush.msra.mxu0 %v573
      %941 = vmatpush.msra.mxu0 %v568
      %942 = vmatpush.msra.mxu0 %v563
      %943 = vmatpush.msra.mxu0 %v558
      %944 = vmatpush.msra.mxu0 %v553
      %945 = vmatpush.msra.mxu0 %v548
      %946 = vmatpush.msra.mxu0 %v543
      %947 = vmatpush.msra.mxu0 %v538
      %948 = vmatpush.msra.mxu0 %v533
      %949 = vmatpush.msra.mxu0 %v528
      %950 = vmatpush.msra.mxu0 %v523
      %951 = vmatpush.msra.mxu0 %v518
      %952 = vmatpush.msra.mxu0 %v513
      %953 = vmatpush.msra.mxu0 %v508
      %954 = vmatpush.msra.mxu0 %v503
      %955 = vmatpush.msra.mxu0 %v498
      %956 = vmatmul.f32.gmra.mxu0 %v333
      %v957 = vpop.f32.mrf.mxu0
      %v958 = vadd.f32 %v938, %v957
      %959 = vdwg.mxu0
      %960 = vmatpush.msra.mxu0 %v653
      %961 = vmatpush.msra.mxu0 %v648
      %962 = vmatpush.msra.mxu0 %v643
      %963 = vmatpush.msra.mxu0 %v638
      %964 = vmatpush.msra.mxu0 %v633
      %965 = vmatpush.msra.mxu0 %v628
      %966 = vmatpush.msra.mxu0 %v623
      %967 = vmatpush.msra.mxu0 %v618
      %968 = vmatpush.msra.mxu0 %v613
      %969 = vmatpush.msra.mxu0 %v608
      %970 = vmatpush.msra.mxu0 %v603
      %971 = vmatpush.msra.mxu0 %v598
      %972 = vmatpush.msra.mxu0 %v593
      %973 = vmatpush.msra.mxu0 %v588
      %974 = vmatpush.msra.mxu0 %v583
      %975 = vmatpush.msra.mxu0 %v578
      %976 = vmatmul.f32.gmra.mxu0 %v334
      %v977 = vpop.f32.mrf.mxu0
      %v978 = vadd.f32 %v958, %v977
      %979 = vdwg.mxu0
      %980 = vmatpush.msra.mxu0 0.0
      %981 = vmatpush.msra.mxu0 0.0
      %982 = vmatpush.msra.mxu0 0.0
      %983 = vmatpush.msra.mxu0 0.0
      %984 = vmatpush.msra.mxu0 0.0
      %985 = vmatpush.msra.mxu0 0.0
      %986 = vmatpush.msra.mxu0 0.0
      %987 = vmatpush.msra.mxu0 0.0
      %988 = vmatpush.msra.mxu0 %v693
      %989 = vmatpush.msra.mxu0 %v688
      %990 = vmatpush.msra.mxu0 %v683
      %991 = vmatpush.msra.mxu0 %v678
      %992 = vmatpush.msra.mxu0 %v673
      %993 = vmatpush.msra.mxu0 %v668
      %994 = vmatpush.msra.mxu0 %v663
      %995 = vmatpush.msra.mxu0 %v658
      %996 = vmatmul.f32.gmra.mxu0 %v698
      %v997 = vpop.f32.mrf.mxu0
      %v998 = vadd.f32 %v978, %v997
      %999 = vdwg.mxu0
      %1000 = vmatpush.msra.mxu0 %v414
      %1001 = vmatpush.msra.mxu0 %v409
      %1002 = vmatpush.msra.mxu0 %v404
      %1003 = vmatpush.msra.mxu0 %v399
      %1004 = vmatpush.msra.mxu0 %v394
      %1005 = vmatpush.msra.mxu0 %v389
      %1006 = vmatpush.msra.mxu0 %v384
      %1007 = vmatpush.msra.mxu0 %v379
      %1008 = vmatpush.msra.mxu0 %v374
      %1009 = vmatpush.msra.mxu0 %v369
      %1010 = vmatpush.msra.mxu0 %v364
      %1011 = vmatpush.msra.mxu0 %v359
      %1012 = vmatpush.msra.mxu0 %v354
      %1013 = vmatpush.msra.mxu0 %v349
      %1014 = vmatpush.msra.mxu0 %v344
      %1015 = vmatpush.msra.mxu0 %v339
      %1016 = vmatmul.f32.gmra.mxu0 %v331
      %v1017 = vpop.f32.mrf.mxu0
      %v1018 = vadd.f32 0.0, %v1017
      %1019 = vdwg.mxu0
      %1020 = vmatpush.msra.mxu0 %v494
      %1021 = vmatpush.msra.mxu0 %v489
      %1022 = vmatpush.msra.mxu0 %v484
      %1023 = vmatpush.msra.mxu0 %v479
      %1024 = vmatpush.msra.mxu0 %v474
      %1025 = vmatpush.msra.mxu0 %v469
      %1026 = vmatpush.msra.mxu0 %v464
      %1027 = vmatpush.msra.mxu0 %v459
      %1028 = vmatpush.msra.mxu0 %v454
      %1029 = vmatpush.msra.mxu0 %v449
      %1030 = vmatpush.msra.mxu0 %v444
      %1031 = vmatpush.msra.mxu0 %v439
      %1032 = vmatpush.msra.mxu0 %v434
      %1033 = vmatpush.msra.mxu0 %v429
      %1034 = vmatpush.msra.mxu0 %v424
      %1035 = vmatpush.msra.mxu0 %v419
      %1036 = vmatmul.f32.gmra.mxu0 %v332
      %v1037 = vpop.f32.mrf.mxu0
      %v1038 = vadd.f32 %v1018, %v1037
      %1039 = vdwg.mxu0
      %1040 = vmatpush.msra.mxu0 %v574
      %1041 = vmatpush.msra.mxu0 %v569
      %1042 = vmatpush.msra.mxu0 %v564
      %1043 = vmatpush.msra.mxu0 %v559
      %1044 = vmatpush.msra.mxu0 %v554
      %1045 = vmatpush.msra.mxu0 %v549
      %1046 = vmatpush.msra.mxu0 %v544
      %1047 = vmatpush.msra.mxu0 %v539
      %1048 = vmatpush.msra.mxu0 %v534
      %1049 = vmatpush.msra.mxu0 %v529
      %1050 = vmatpush.msra.mxu0 %v524
      %1051 = vmatpush.msra.mxu0 %v519
      %1052 = vmatpush.msra.mxu0 %v514
      %1053 = vmatpush.msra.mxu0 %v509
      %1054 = vmatpush.msra.mxu0 %v504
      %1055 = vmatpush.msra.mxu0 %v499
      %1056 = vmatmul.f32.gmra.mxu0 %v333
      %v1057 = vpop.f32.mrf.mxu0
      %v1058 = vadd.f32 %v1038, %v1057
      %1059 = vdwg.mxu0
      %1060 = vmatpush.msra.mxu0 %v654
      %1061 = vmatpush.msra.mxu0 %v649
      %1062 = vmatpush.msra.mxu0 %v644
      %1063 = vmatpush.msra.mxu0 %v639
      %1064 = vmatpush.msra.mxu0 %v634
      %1065 = vmatpush.msra.mxu0 %v629
      %1066 = vmatpush.msra.mxu0 %v624
      %1067 = vmatpush.msra.mxu0 %v619
      %1068 = vmatpush.msra.mxu0 %v614
      %1069 = vmatpush.msra.mxu0 %v609
      %1070 = vmatpush.msra.mxu0 %v604
      %1071 = vmatpush.msra.mxu0 %v599
      %1072 = vmatpush.msra.mxu0 %v594
      %1073 = vmatpush.msra.mxu0 %v589
      %1074 = vmatpush.msra.mxu0 %v584
      %1075 = vmatpush.msra.mxu0 %v579
      %1076 = vmatmul.f32.gmra.mxu0 %v334
      %v1077 = vpop.f32.mrf.mxu0
      %v1078 = vadd.f32 %v1058, %v1077
      %1079 = vdwg.mxu0
      %1080 = vmatpush.msra.mxu0 0.0
      %1081 = vmatpush.msra.mxu0 0.0
      %1082 = vmatpush.msra.mxu0 0.0
      %1083 = vmatpush.msra.mxu0 0.0
      %1084 = vmatpush.msra.mxu0 0.0
      %1085 = vmatpush.msra.mxu0 0.0
      %1086 = vmatpush.msra.mxu0 0.0
      %1087 = vmatpush.msra.mxu0 0.0
      %1088 = vmatpush.msra.mxu0 %v694
      %1089 = vmatpush.msra.mxu0 %v689
      %1090 = vmatpush.msra.mxu0 %v684
      %1091 = vmatpush.msra.mxu0 %v679
      %1092 = vmatpush.msra.mxu0 %v674
      %1093 = vmatpush.msra.mxu0 %v669
      %1094 = vmatpush.msra.mxu0 %v664
      %1095 = vmatpush.msra.mxu0 %v659
      %1096 = vmatmul.f32.gmra.mxu0 %v698
      %v1097 = vpop.f32.mrf.mxu0
      %v1098 = vadd.f32 %v1078, %v1097
      %1099 = vdwg.mxu0
      %1100 = vmatpush.msra.mxu0 %v415
      %1101 = vmatpush.msra.mxu0 %v410
      %1102 = vmatpush.msra.mxu0 %v405
      %1103 = vmatpush.msra.mxu0 %v400
      %1104 = vmatpush.msra.mxu0 %v395
      %1105 = vmatpush.msra.mxu0 %v390
      %1106 = vmatpush.msra.mxu0 %v385
      %1107 = vmatpush.msra.mxu0 %v380
      %1108 = vmatpush.msra.mxu0 %v375
      %1109 = vmatpush.msra.mxu0 %v370
      %1110 = vmatpush.msra.mxu0 %v365
      %1111 = vmatpush.msra.mxu0 %v360
      %1112 = vmatpush.msra.mxu0 %v355
      %1113 = vmatpush.msra.mxu0 %v350
      %1114 = vmatpush.msra.mxu0 %v345
      %1115 = vmatpush.msra.mxu0 %v340
      %1116 = vmatmul.f32.gmra.mxu0 %v331
      %v1117 = vpop.f32.mrf.mxu0
      %v1118 = vadd.f32 0.0, %v1117
      %1119 = vdwg.mxu0
      %1120 = vmatpush.msra.mxu0 %v495
      %1121 = vmatpush.msra.mxu0 %v490
      %1122 = vmatpush.msra.mxu0 %v485
      %1123 = vmatpush.msra.mxu0 %v480
      %1124 = vmatpush.msra.mxu0 %v475
      %1125 = vmatpush.msra.mxu0 %v470
      %1126 = vmatpush.msra.mxu0 %v465
      %1127 = vmatpush.msra.mxu0 %v460
      %1128 = vmatpush.msra.mxu0 %v455
      %1129 = vmatpush.msra.mxu0 %v450
      %1130 = vmatpush.msra.mxu0 %v445
      %1131 = vmatpush.msra.mxu0 %v440
      %1132 = vmatpush.msra.mxu0 %v435
      %1133 = vmatpush.msra.mxu0 %v430
      %1134 = vmatpush.msra.mxu0 %v425
      %1135 = vmatpush.msra.mxu0 %v420
      %1136 = vmatmul.f32.gmra.mxu0 %v332
      %v1137 = vpop.f32.mrf.mxu0
      %v1138 = vadd.f32 %v1118, %v1137
      %1139 = vdwg.mxu0
      %1140 = vmatpush.msra.mxu0 %v575
      %1141 = vmatpush.msra.mxu0 %v570
      %1142 = vmatpush.msra.mxu0 %v565
      %1143 = vmatpush.msra.mxu0 %v560
      %1144 = vmatpush.msra.mxu0 %v555
      %1145 = vmatpush.msra.mxu0 %v550
      %1146 = vmatpush.msra.mxu0 %v545
      %1147 = vmatpush.msra.mxu0 %v540
      %1148 = vmatpush.msra.mxu0 %v535
      %1149 = vmatpush.msra.mxu0 %v530
      %1150 = vmatpush.msra.mxu0 %v525
      %1151 = vmatpush.msra.mxu0 %v520
      %1152 = vmatpush.msra.mxu0 %v515
      %1153 = vmatpush.msra.mxu0 %v510
      %1154 = vmatpush.msra.mxu0 %v505
      %1155 = vmatpush.msra.mxu0 %v500
      %1156 = vmatmul.f32.gmra.mxu0 %v333
      %v1157 = vpop.f32.mrf.mxu0
      %v1158 = vadd.f32 %v1138, %v1157
      %1159 = vdwg.mxu0
      %1160 = vmatpush.msra.mxu0 %v655
      %1161 = vmatpush.msra.mxu0 %v650
      %1162 = vmatpush.msra.mxu0 %v645
      %1163 = vmatpush.msra.mxu0 %v640
      %1164 = vmatpush.msra.mxu0 %v635
      %1165 = vmatpush.msra.mxu0 %v630
      %1166 = vmatpush.msra.mxu0 %v625
      %1167 = vmatpush.msra.mxu0 %v620
      %1168 = vmatpush.msra.mxu0 %v615
      %1169 = vmatpush.msra.mxu0 %v610
      %1170 = vmatpush.msra.mxu0 %v605
      %1171 = vmatpush.msra.mxu0 %v600
      %1172 = vmatpush.msra.mxu0 %v595
      %1173 = vmatpush.msra.mxu0 %v590
      %1174 = vmatpush.msra.mxu0 %v585
      %1175 = vmatpush.msra.mxu0 %v580
      %1176 = vmatmul.f32.gmra.mxu0 %v334
      %v1177 = vpop.f32.mrf.mxu0
      %v1178 = vadd.f32 %v1158, %v1177
      %1179 = vdwg.mxu0
      %1180 = vmatpush.msra.mxu0 0.0
      %1181 = vmatpush.msra.mxu0 0.0
      %1182 = vmatpush.msra.mxu0 0.0
      %1183 = vmatpush.msra.mxu0 0.0
      %1184 = vmatpush.msra.mxu0 0.0
      %1185 = vmatpush.msra.mxu0 0.0
      %1186 = vmatpush.msra.mxu0 0.0
      %1187 = vmatpush.msra.mxu0 0.0
      %1188 = vmatpush.msra.mxu0 %v695
      %1189 = vmatpush.msra.mxu0 %v690
      %1190 = vmatpush.msra.mxu0 %v685
      %1191 = vmatpush.msra.mxu0 %v680
      %1192 = vmatpush.msra.mxu0 %v675
      %1193 = vmatpush.msra.mxu0 %v670
      %1194 = vmatpush.msra.mxu0 %v665
      %1195 = vmatpush.msra.mxu0 %v660
      %1196 = vmatmul.f32.gmra.mxu0 %v698
      %v1197 = vpop.f32.mrf.mxu0
      %v1198 = vadd.f32 %v1178, %v1197
      %1199 = vdwg.mxu0
      %1202 = vrot.lane.b32.xlu0 %v898, 96
      %v1203 = vpop.permute.xlu0 %1202
      %1204 = vrot.lane.b32.xlu0 %v998, 96
      %v1205 = vpop.permute.xlu0 %1204
      %vm1206 = vcmask 785408
      %v1207 = vsel %vm1206, %v1203, %v1205
      %v1210 = vmax.f32 %v798, %v1207
      %v1211 = vmax.f32 %v898, %v1205
      %1214 = vrot.lane.b32.xlu0 %v1098, 96
      %v1215 = vpop.permute.xlu0 %1214
      %1216 = vrot.lane.b32.xlu0 %v1198, 96
      %v1217 = vpop.permute.xlu0 %1216
      %v1218 = vsel %vm1206, %v1215, %v1217
      %v1221 = vmax.f32 %v998, %v1218
      %v1222 = vmax.f32 %v1098, %v1217
      %1225 = vrot.lane.b32.xlu0 %v1221, 64
      %v1226 = vpop.permute.xlu0 %1225
      %1227 = vrot.lane.b32.xlu0 %v1222, 64
      %v1228 = vpop.permute.xlu0 %1227
      %v1229 = vsel %vm696, %v1226, %v1228
      %v1232 = vmax.f32 %v1210, %v1229
      %v1233 = vmax.f32 %v1211, %v1228
      %v1234 = vld [vmem:[%s313] sm:$0x3]
      %v1236 = vperm.slane %v1234, 0
      %v1237 = vperm.slane %v1234, 1
      %v1240 = vadd.f32 %v1232, %v1236
      %v1241 = vadd.f32 %v1233, %v1237
      %v1242 = vmax.f32 %v1240, 0.0
      %v1243 = vmax.f32 %v1241, 0.0
      %v1244 = vld [vmem:[%s320] sm:$0xff]
      %v1245 = vld [vmem:[%s320 + $0x8] sm:$0xff]
      %v1246 = vld [vmem:[%s320 + $0x10] sm:$0xff]
      %v1247 = vld [vmem:[%s320 + $0x18] sm:$0xff]
      %v1248 = vld [vmem:[%s320 + $0x20] sm:$0xff]
      %v1249 = vld [vmem:[%s320 + $0x28] sm:$0xff]
      %v1250 = vld [vmem:[%s320 + $0x30] sm:$0xff]
      %v1251 = vld [vmem:[%s320 + $0x38] sm:$0xff]
      %v1252 = vld [vmem:[%s320 + $0x40] sm:$0xff]
      %v1253 = vld [vmem:[%s320 + $0x48] sm:$0xff]
      %v1254 = vld [vmem:[%s320 + $0x50] sm:$0xff]
      %v1255 = vld [vmem:[%s320 + $0x58] sm:$0xff]
      %v1256 = vld [vmem:[%s320 + $0x60] sm:$0xff]
      %v1257 = vld [vmem:[%s320 + $0x68] sm:$0xff]
      %v1258 = vld [vmem:[%s320 + $0x70] sm:$0xff]
      %v1259 = vld [vmem:[%s320 + $0x78] sm:$0xff]
      %v1260 = vld [vmem:[%s320 + $0x80] sm:$0xff]
      %v1261 = vld [vmem:[%s320 + $0x88] sm:$0xff]
      %v1262 = vld [vmem:[%s320 + $0x90] sm:$0xff]
      %v1263 = vld [vmem:[%s320 + $0x98] sm:$0xff]
      %vm1264 = vcmask 261120
      %v1266 = vsel %vm1264, %v1243, 0
      %1268 = vmatpush.msra.mxu0 %v1259
      %1269 = vmatpush.msra.mxu0 %v1258
      %1270 = vmatpush.msra.mxu0 %v1257
      %1271 = vmatpush.msra.mxu0 %v1256
      %1272 = vmatpush.msra.mxu0 %v1255
      %1273 = vmatpush.msra.mxu0 %v1254
      %1274 = vmatpush.msra.mxu0 %v1253
      %1275 = vmatpush.msra.mxu0 %v1252
      %1276 = vmatpush.msra.mxu0 %v1251
      %1277 = vmatpush.msra.mxu0 %v1250
      %1278 = vmatpush.msra.mxu0 %v1249
      %1279 = vmatpush.msra.mxu0 %v1248
      %1280 = vmatpush.msra.mxu0 %v1247
      %1281 = vmatpush.msra.mxu0 %v1246
      %1282 = vmatpush.msra.mxu0 %v1245
      %1283 = vmatpush.msra.mxu0 %v1244
      %1284 = vmatmul.f32.gmra.mxu0 %v1242
      %v1285 = vpop.f32.mrf.mxu0
      %v1286 = vadd.f32 0.0, %v1285
      %1287 = vdwg.mxu0
      %1288 = vmatpush.msra.mxu0 0.0
      %1289 = vmatpush.msra.mxu0 0.0
      %1290 = vmatpush.msra.mxu0 0.0
      %1291 = vmatpush.msra.mxu0 0.0
      %1292 = vmatpush.msra.mxu0 0.0
      %1293 = vmatpush.msra.mxu0 0.0
      %1294 = vmatpush.msra.mxu0 0.0
      %1295 = vmatpush.msra.mxu0 0.0
      %1296 = vmatpush.msra.mxu0 0.0
      %1297 = vmatpush.msra.mxu0 0.0
      %1298 = vmatpush.msra.mxu0 0.0
      %1299 = vmatpush.msra.mxu0 0.0
      %1300 = vmatpush.msra.mxu0 %v1263
      %1301 = vmatpush.msra.mxu0 %v1262
      %1302 = vmatpush.msra.mxu0 %v1261
      %1303 = vmatpush.msra.mxu0 %v1260
      %1304 = vmatmul.f32.gmra.mxu0 %v1266
      %v1305 = vpop.f32.mrf.mxu0
      %v1306 = vadd.f32 %v1286, %v1305
      %1307 = vdwg.mxu0
      %1309 = vrot.lane.b32.xlu0 %v1306, 98
      %v1310 = vpop.permute.xlu0 %1309
      %v1312 = vmax.f32 %v1306, %v1310
      %1314 = vrot.lane.b32.xlu0 %v1312, 68
      %v1315 = vpop.permute.xlu0 %1314
      %v1317 = vmax.f32 %v1312, %v1315
      %v1318 = vld [vmem:[%s325] sm:$0x1]
      %v1320 = vperm.slane %v1318, 0
      %v1322 = vadd.f32 %v1317, %v1320
      %v1323 = vmax.f32 %v1322, 0.0
      %vm1324 = vcmask 244736
      %1325 = vst.msk [vmem:[%s330] sm:$0xff] %vm1324, %v1323
      %p1326 = scmp.lt.s32.totalorder %s25, 1
      %s1327 = scalar_select %p1326, %s25, 1
      %s1328 = smul.addr %s1327, 8
      %s1329 = scalar_lea.vmem %s6, %s1328
      // Predicated region
      $region41: #{representation_network_pallas.2} parent=39 // pred_check
        %p1330 = pneg %p181
      $region42: #{representation_network_pallas.2} parent=39 // pred_check_branch
        %1332 = sbr.rel (%p1330) target = $region44
      $region43: #{representation_network_pallas.2} parent=39 // pred_region
        _
      $region44: #{representation_network_pallas.2} parent=39 // pred_fallthru
        _
    $region40: #{representation_network_pallas.2} parent=5 // pred_fallthru
      _
    %p1333 = scmp.le.s32.totalorder 2, %s20
    // Predicated region
    $region45: #{representation_network_pallas.2} parent=5 // pred_check
      %p1334 = pneg %p1333
    $region46: #{representation_network_pallas.2} parent=5 // pred_check_branch
      %1336 = sbr.rel (%p1334) target = $region48
    $region47: #{representation_network_pallas.2} parent=5 // pred_region
      %s1337 = ssub.s32 %s20, 2
      // Predicated region
      $region49: #{representation_network_pallas.2} parent=47 // pred_check
        %p1338 = pneg %p187
      $region50: #{representation_network_pallas.2} parent=47 // pred_check_branch
        %1340 = sbr.rel (%p1338) target = $region52
      $region51: #{representation_network_pallas.2} parent=47 // pred_region
        %p1341 = scmp.lt.s32.totalorder %s26, 1
        %s1342 = scalar_select %p1341, %s26, 1
        %s1343 = smul.addr %s1342, 8
        %s1344 = scalar_lea.vmem %s6, %s1343
      $region52: #{representation_network_pallas.2} parent=47 // pred_fallthru
        _
    $region48: #{representation_network_pallas.2} parent=5 // pred_fallthru
      _
  $region6: #{representation_network_pallas.2} parent=0 // loop_footer
    %s24 = sadd.s32 1, %s20
  $region7: #{representation_network_pallas.2} parent=0 // loop_footer_branch
    %19 = sbr.rel target = $region3
  $region8: #{representation_network_pallas.2} parent=0 // loop_exit
    _

</llo_original>
